<compile_context>
chip_gen: v6e
topology: v6e:2x2x1
jax: 0.10.0
libtpu: 0.0.40
codegen_flags: <defaults>
</compile_context>

<pallas_src>
import functools
from collections import namedtuple

import jax
import jax.numpy as jnp
from jax.experimental import pallas as pl
from jax.experimental.pallas import tpu as pltpu

VMEM_SPEC = pl.BlockSpec(memory_space=pltpu.MemorySpace.VMEM)
PAD = 128  # lane width used for zero-padded intermediate channel dims
HIGH = jax.lax.Precision.HIGHEST

Meta = namedtuple(
    "Meta",
    ["num_points", "num_features", "latent_dim", "K1",
     "enc_slope", "gen_slope", "dis_slope"],
)

HPARAMS = dict(
    latent_dim=8,
    encoder_filters=(8, 16, 32),
    encoder_kernel_sizes=(3, 1, 1),
    generator_filters=(16, 32),
    discriminator_filters=(16, 8),
    encoder_relu_slope=0.0,       # 0.0 -> nn.ReLU (default branch of the module)
    generator_relu_slope=0.0,
    discriminator_relu_slope=0.0,
)


# ------------------------------ activations --------------------------------

def _act(x, slope):
    if slope > 0.0:                      # LeakyReLU branch of the PyTorch module
        return jnp.where(x > 0, x, slope * x)
    return jnp.maximum(x, 0.0)           # ReLU branch


# ----------------------------- Pallas kernels ------------------------------

def _fused_fwd_kernel(*refs, n_conv, n_gen, latent_dim, enc_slope, gen_slope):
    # Input refs (in order):
    #   x_cols  : (B, L1, K1*Cin)   im2col patches of the input (channels-last)
    #   eps     : (B, latent)
    #   conv    : n_conv pairs of (w, b); w0 is (K1*Cin, PAD), others (PAD, PAD)
    #   fc      : (w, b)            (PAD, PAD)
    #   mustd   : (w, b)            mu cols [0:latent], std cols [latent:2*latent]
    #   gen     : n_gen pairs of (w, b); last has unpadded Cout = num_points*(3+F)
    # Output refs: z, mu, logvar, recon_flat
    idx = 0

    def nxt():
        nonlocal idx
        r = refs[idx]
        idx += 1
        return r

    x_cols_ref = nxt()
    eps_ref = nxt()
    conv_wb = [(nxt(), nxt()) for _ in range(n_conv)]
    fc_w, fc_b = nxt(), nxt()
    ms_w, ms_b = nxt(), nxt()
    gen_wb = [(nxt(), nxt()) for _ in range(n_gen)]
    z_ref, mu_ref, logvar_ref, recon_ref = refs[idx:idx + 4]

    f32 = jnp.float32

    # ---- encoder conv stack (ReLU on all but the last conv) ----
    h = x_cols_ref[...]                                   # (B, L1, K1*Cin)
    for li, (w_ref, b_ref) in enumerate(conv_wb):
        h = jnp.einsum("blc,cd->bld", h, w_ref[...],
                       preferred_element_type=f32) + b_ref[...]
        if li < n_conv - 1:
            h = _act(h, enc_slope)

    # ---- max over points fused as epilogue of the last conv ----
    pooled = jnp.max(h, axis=1)                           # (B, PAD)

    # ---- encoder head ----
    logit = _act(jnp.dot(pooled, fc_w[...], preferred_element_type=f32)
                 + fc_b[...], enc_slope)                  # (B, PAD)
    y = jnp.dot(logit, ms_w[...], preferred_element_type=f32) + ms_b[...]
    mu = y[:, :latent_dim]
    logvar = y[:, latent_dim:2 * latent_dim]

    # ---- reparameterize: z = eps * exp(0.5 * logvar) + mu ----
    z = eps_ref[...] * jnp.exp(0.5 * logvar) + mu         # (B, latent)

    # ---- generator MLP (ReLU on all but the last linear) ----
    g = z
    for li, (w_ref, b_ref) in enumerate(gen_wb):
        g = jnp.dot(g, w_ref[...], preferred_element_type=f32) + b_ref[...]
        if li < n_gen - 1:
            g = _act(g, gen_slope)

    z_ref[...] = z
    mu_ref[...] = mu
    logvar_ref[...] = logvar
    recon_ref[...] = g                                    # flat (B, num_points*(3+F))


def _fused_mlp_kernel(*refs, n_layers, slope):
    # refs: x, (w, b) * n_layers, out
    x_ref = refs[0]
    wb = [(refs[1 + 2 * i], refs[2 + 2 * i]) for i in range(n_layers)]
    out_ref = refs[1 + 2 * n_layers]
    h = x_ref[...]
    for li, (w_ref, b_ref) in enumerate(wb):
        h = jnp.dot(h, w_ref[...], preferred_element_type=jnp.float32) + b_ref[...]
        if li < n_layers - 1:
            h = _act(h, slope)
    out_ref[...] = h


# ----------------------- parameters (deterministic) -------------------------
# Layouts (unpadded, "math" layout):
#   Conv1d weight : (K, Cin, Cout)   (PyTorch stores (Cout, Cin, K))
#   Linear weight : (Cin, Cout)      (PyTorch stores (Cout, Cin))
#   biases        : (1, Cout)

def init_params(key, num_points, num_features, hp):
    in_ch = 3 + num_features
    keys = iter(jax.random.split(key, 64))

    def rnd(shape, fan_in):
        return jax.random.normal(next(keys), shape, jnp.float32) / jnp.sqrt(
            jnp.float32(fan_in))

    params = {}

    ef = list(hp["encoder_filters"])
    ks = list(hp["encoder_kernel_sizes"])
    chans = [in_ch] + ef
    enc_conv = []
    for i in range(len(ef)):
        K, cin, cout = ks[i], chans[i], chans[i + 1]
        enc_conv.append((rnd((K, cin, cout), cin * K), rnd((1, cout), cin * K)))
    params["enc_conv"] = enc_conv

    params["enc_fc"] = (rnd((ef[-1], ef[-2]), ef[-1]), rnd((1, ef[-2]), ef[-1]))
    params["mu"] = (rnd((ef[-2], hp["latent_dim"]), ef[-2]),
                    rnd((1, hp["latent_dim"]), ef[-2]))
    params["std"] = (rnd((ef[-2], hp["latent_dim"]), ef[-2]),
                     rnd((1, hp["latent_dim"]), ef[-2]))

    gf = list(hp["generator_filters"])
    gdims = [hp["latent_dim"]] + gf + [num_points * (3 + num_features)]
    params["gen"] = [(rnd((gdims[i], gdims[i + 1]), gdims[i]),
                      rnd((1, gdims[i + 1]), gdims[i]))
                     for i in range(len(gdims) - 1)]

    df = list(hp["discriminator_filters"])
    ddims = [hp["latent_dim"]] + df + [1]
    params["dis"] = [(rnd((ddims[i], ddims[i + 1]), ddims[i]),
                      rnd((1, ddims[i + 1]), ddims[i]))
                     for i in range(len(ddims) - 1)]
    return params


def _pad2(w, rows, cols):
    return jnp.pad(w, ((0, rows - w.shape[0]), (0, cols - w.shape[1])))


def _padb(b, cols):
    b = jnp.reshape(b, (1, -1))
    return jnp.pad(b, ((0, 0), (0, cols - b.shape[1])))


def prepare_padded_params(params):
    """Flatten conv weights (K,Cin,Cout)->(K*Cin,Cout), zero-pad channel dims to 128,
    and concatenate mu/std into a single matmul. Padding is exact (extra terms are 0)."""
    pp = {}

    enc = []
    for i, (w, b) in enumerate(params["enc_conv"]):
        K, cin, cout = w.shape
        if i > 0 and K != 1:
            raise NotImplementedError(
                "only the first encoder conv may have kernel_size > 1")
        wf = jnp.reshape(w, (K * cin, cout))
        rows = wf.shape[0] if i == 0 else PAD
        enc.append((_pad2(wf, rows, PAD), _padb(b, PAD)))
    pp["enc_conv"] = enc

    fc_w, fc_b = params["enc_fc"]
    pp["enc_fc"] = (_pad2(fc_w, PAD, PAD), _padb(fc_b, PAD))

    mu_w, mu_b = params["mu"]
    std_w, std_b = params["std"]
    wms = jnp.concatenate([mu_w, std_w], axis=1)
    bms = jnp.concatenate([jnp.reshape(mu_b, (1, -1)),
                           jnp.reshape(std_b, (1, -1))], axis=1)
    pp["mustd"] = (_pad2(wms, PAD, PAD), _padb(bms, PAD))

    gen = []
    n_gen = len(params["gen"])
    for i, (w, b) in enumerate(params["gen"]):
        rows = w.shape[0] if i == 0 else PAD
        cols = w.shape[1] if i == n_gen - 1 else PAD
        gen.append((_pad2(w, rows, cols), _padb(b, cols)))
    pp["gen"] = gen

    dis = []
    n_dis = len(params["dis"])
    for i, (w, b) in enumerate(params["dis"]):
        rows = w.shape[0] if i == 0 else PAD
        cols = w.shape[1] if i == n_dis - 1 else PAD
        dis.append((_pad2(w, rows, cols), _padb(b, cols)))
    pp["dis"] = dis
    return pp


# ------------------------------ forward pass -------------------------------

def aae3d_forward(pp, x_ncl, eps, *, meta):
    """x_ncl: (B, 3+F, num_points) [PyTorch NCL]. Returns (recon, mu, logvar, z)."""
    B = x_ncl.shape[0]
    K1 = meta.K1
    x_nlc = jnp.transpose(x_ncl, (0, 2, 1))               # (B, L, Cin), one tiny transpose
    L = x_nlc.shape[1]
    L1 = L - K1 + 1                                        # stride=1, no padding
    # im2col patches for conv1: (B, L1, K1*Cin); flat index k*Cin + c matches weight flatten
    x_cols = jnp.concatenate([x_nlc[:, k:k + L1, :] for k in range(K1)], axis=-1)

    flat_in = [x_cols, eps]
    for w, b in pp["enc_conv"]:
        flat_in += [w, b]
    flat_in += [pp["enc_fc"][0], pp["enc_fc"][1], pp["mustd"][0], pp["mustd"][1]]
    for w, b in pp["gen"]:
        flat_in += [w, b]

    out_flat = meta.num_points * (3 + meta.num_features)
    kernel = functools.partial(
        _fused_fwd_kernel,
        n_conv=len(pp["enc_conv"]), n_gen=len(pp["gen"]),
        latent_dim=meta.latent_dim,
        enc_slope=meta.enc_slope, gen_slope=meta.gen_slope)

    z, mu, logvar, recon_flat = pl.pallas_call(
        kernel,
        out_shape=(
            jax.ShapeDtypeStruct((B, meta.latent_dim), jnp.float32),
            jax.ShapeDtypeStruct((B, meta.latent_dim), jnp.float32),
            jax.ShapeDtypeStruct((B, meta.latent_dim), jnp.float32),
            jax.ShapeDtypeStruct((B, out_flat), jnp.float32),
        ),
        in_specs=[VMEM_SPEC] * len(flat_in),
        out_specs=(VMEM_SPEC, VMEM_SPEC, VMEM_SPEC, VMEM_SPEC),
    )(*flat_in)

    # matches torch: output.view(-1, 3 + num_features, num_points)
    recon = recon_flat.reshape(B, 3 + meta.num_features, meta.num_points)
    return recon, mu, logvar, z


def discriminate(pp, z, *, meta):
    B = z.shape[0]
    flat = [z]
    for w, b in pp["dis"]:
        flat += [w, b]
    kernel = functools.partial(_fused_mlp_kernel,
                               n_layers=len(pp["dis"]), slope=meta.dis_slope)
    return pl.pallas_call(
        kernel,
        out_shape=jax.ShapeDtypeStruct((B, 1), jnp.float32),
        in_specs=[VMEM_SPEC] * len(flat),
        out_specs=VMEM_SPEC,
    )(*flat)


# ------------------------- pure-JAX reference path --------------------------

def reference_forward(params, x_ncl, eps, meta):
    h = jnp.transpose(x_ncl, (0, 2, 1))
    n_conv = len(params["enc_conv"])
    for i, (w, b) in enumerate(params["enc_conv"]):
        K = w.shape[0]
        L_out = h.shape[1] - K + 1
        acc = jnp.zeros((h.shape[0], L_out, w.shape[2]), jnp.float32)
        for k in range(K):
            acc = acc + jnp.einsum("blc,cd->bld", h[:, k:k + L_out, :], w[k],
                                   precision=HIGH)
        h = acc + b
        if i < n_conv - 1:
            h = _act(h, meta.enc_slope)
    pooled = jnp.max(h, axis=1)
    fc_w, fc_b = params["enc_fc"]
    logit = _act(jnp.dot(pooled, fc_w, precision=HIGH) + fc_b, meta.enc_slope)
    mu = jnp.dot(logit, params["mu"][0], precision=HIGH) + params["mu"][1]
    logvar = jnp.dot(logit, params["std"][0], precision=HIGH) + params["std"][1]
    z = eps * jnp.exp(0.5 * logvar) + mu
    g = z
    n_gen = len(params["gen"])
    for i, (w, b) in enumerate(params["gen"]):
        g = jnp.dot(g, w, precision=HIGH) + b
        if i < n_gen - 1:
            g = _act(g, meta.gen_slope)
    recon = g.reshape(z.shape[0], 3 + meta.num_features, meta.num_points)
    return recon, mu, logvar, z


def reference_discriminate(params, z, meta):
    h = z
    n = len(params["dis"])
    for i, (w, b) in enumerate(params["dis"]):
        h = jnp.dot(h, w, precision=HIGH) + b
        if i < n - 1:
            h = _act(h, meta.dis_slope)
    return h


# ---------------------------------- main ------------------------------------

if __name__ == "__main__":
    num_points = 16
    num_features = 1            # input channels = 3 + num_features = 4
    batch = 2
    hp = HPARAMS

    meta = Meta(num_points=num_points, num_features=num_features,
                latent_dim=hp["latent_dim"], K1=hp["encoder_kernel_sizes"][0],
                enc_slope=hp["encoder_relu_slope"],
                gen_slope=hp["generator_relu_slope"],
                dis_slope=hp["discriminator_relu_slope"])

    key = jax.random.PRNGKey(0)
    pkey, xkey, ekey = jax.random.split(key, 3)

    params = init_params(pkey, num_points, num_features, hp)
    pp = prepare_padded_params(params)
    x = jax.random.normal(xkey, (batch, 3 + num_features, num_points), jnp.float32)
    eps = jax.random.normal(ekey, (batch, hp["latent_dim"]), jnp.float32)

    fwd = jax.jit(lambda pp_, x_, e_: aae3d_forward(pp_, x_, e_, meta=meta))
    dis = jax.jit(lambda pp_, z_: discriminate(pp_, z_, meta=meta))

    recon, mu, logvar, z = fwd(pp, x, eps)
    logit = dis(pp, z)
    jax.block_until_ready((recon, mu, logvar, z, logit))

    # correctness vs pure-JAX reference (unpadded weights)
    r_recon, r_mu, r_logvar, r_z = reference_forward(params, x, eps, meta)
    r_logit = reference_discriminate(params, r_z, meta)

    assert recon.shape == (batch, 3 + num_features, num_points)
    assert mu.shape == (batch, hp["latent_dim"])
    assert logvar.shape == (batch, hp["latent_dim"])
    assert z.shape == (batch, hp["latent_dim"])
    assert logit.shape == (batch, 1)

    tol = dict(rtol=2e-2, atol=2e-2)
    ok = (bool(jnp.allclose(recon, r_recon, **tol))
          and bool(jnp.allclose(mu, r_mu, **tol))
          and bool(jnp.allclose(logvar, r_logvar, **tol))
          and bool(jnp.allclose(z, r_z, **tol))
          and bool(jnp.allclose(logit, r_logit, **tol)))
    assert ok, "Pallas fused forward does not match pure-JAX reference"

    print("KERNEL_OK")
</pallas_src>

<mosaic_0001>
module attributes {stable_mosaic.version = 11 : i64} {
  func.func @_fused_fwd_kernel(%arg0: memref<2x14x12xf32, #tpu.memory_space<vmem>>, %arg1: memref<2x8xf32, #tpu.memory_space<vmem>>, %arg2: memref<12x128xf32, #tpu.memory_space<vmem>>, %arg3: memref<1x128xf32, #tpu.memory_space<vmem>>, %arg4: memref<128x128xf32, #tpu.memory_space<vmem>>, %arg5: memref<1x128xf32, #tpu.memory_space<vmem>>, %arg6: memref<128x128xf32, #tpu.memory_space<vmem>>, %arg7: memref<1x128xf32, #tpu.memory_space<vmem>>, %arg8: memref<128x128xf32, #tpu.memory_space<vmem>>, %arg9: memref<1x128xf32, #tpu.memory_space<vmem>>, %arg10: memref<128x128xf32, #tpu.memory_space<vmem>>, %arg11: memref<1x128xf32, #tpu.memory_space<vmem>>, %arg12: memref<8x128xf32, #tpu.memory_space<vmem>>, %arg13: memref<1x128xf32, #tpu.memory_space<vmem>>, %arg14: memref<128x128xf32, #tpu.memory_space<vmem>>, %arg15: memref<1x128xf32, #tpu.memory_space<vmem>>, %arg16: memref<128x64xf32, #tpu.memory_space<vmem>>, %arg17: memref<1x64xf32, #tpu.memory_space<vmem>>, %arg18: memref<2x8xf32, #tpu.memory_space<vmem>>, %arg19: memref<2x8xf32, #tpu.memory_space<vmem>>, %arg20: memref<2x8xf32, #tpu.memory_space<vmem>>, %arg21: memref<2x64xf32, #tpu.memory_space<vmem>>) attributes {dimension_semantics = [], scalar_prefetch = 0 : i64, scratch_operands = 0 : i64, tpu.core_type = #tpu.core_type<tc>} {
    %c0 = arith.constant 0 : index
    %c0_0 = arith.constant 0 : index
    %c0_1 = arith.constant 0 : index
    %0 = vector.load %arg0[%c0, %c0_0, %c0_1] : memref<2x14x12xf32, #tpu.memory_space<vmem>>, vector<2x14x12xf32>
    %c0_2 = arith.constant 0 : index
    %c0_3 = arith.constant 0 : index
    %1 = vector.load %arg2[%c0_2, %c0_3] : memref<12x128xf32, #tpu.memory_space<vmem>>, vector<12x128xf32>
    "tpu.trace_start"() <{level = 10 : i32, message = "blc,cd->bld"}> : () -> ()
    %cst = arith.constant dense<0.000000e+00> : vector<2x14x128xf32>
    %2 = tpu.matmul %0, %1, %cst {dimension_numbers = #tpu.dot_dimension_numbers<[2], [0], [0, 1], [1], [0, 0, 0, 1, 1, 1], [], []>} : vector<2x14x12xf32>, vector<12x128xf32>, vector<2x14x128xf32> -> vector<2x14x128xf32>
    "tpu.trace_stop"() : () -> ()
    %c0_4 = arith.constant 0 : index
    %c0_5 = arith.constant 0 : index
    %3 = vector.load %arg3[%c0_4, %c0_5] : memref<1x128xf32, #tpu.memory_space<vmem>>, vector<1x128xf32>
    %4 = vector.shape_cast %3 : vector<1x128xf32> to vector<1x1x128xf32>
    %5 = vector.broadcast %4 : vector<1x1x128xf32> to vector<2x14x128xf32>
    %6 = arith.addf %2, %5 : vector<2x14x128xf32>
    %cst_6 = arith.constant 0.000000e+00 : f32
    %7 = vector.broadcast %cst_6 : f32 to vector<2x14x128xf32>
    %8 = arith.maximumf %6, %7 : vector<2x14x128xf32>
    %c0_7 = arith.constant 0 : index
    %c0_8 = arith.constant 0 : index
    %9 = vector.load %arg4[%c0_7, %c0_8] : memref<128x128xf32, #tpu.memory_space<vmem>>, vector<128x128xf32>
    "tpu.trace_start"() <{level = 10 : i32, message = "blc,cd->bld"}> : () -> ()
    %cst_9 = arith.constant dense<0.000000e+00> : vector<2x14x128xf32>
    %10 = tpu.matmul %8, %9, %cst_9 {dimension_numbers = #tpu.dot_dimension_numbers<[2], [0], [0, 1], [1], [0, 0, 0, 1, 1, 1], [], []>} : vector<2x14x128xf32>, vector<128x128xf32>, vector<2x14x128xf32> -> vector<2x14x128xf32>
    "tpu.trace_stop"() : () -> ()
    %c0_10 = arith.constant 0 : index
    %c0_11 = arith.constant 0 : index
    %11 = vector.load %arg5[%c0_10, %c0_11] : memref<1x128xf32, #tpu.memory_space<vmem>>, vector<1x128xf32>
    %12 = vector.shape_cast %11 : vector<1x128xf32> to vector<1x1x128xf32>
    %13 = vector.broadcast %12 : vector<1x1x128xf32> to vector<2x14x128xf32>
    %14 = arith.addf %10, %13 : vector<2x14x128xf32>
    %cst_12 = arith.constant 0.000000e+00 : f32
    %15 = vector.broadcast %cst_12 : f32 to vector<2x14x128xf32>
    %16 = arith.maximumf %14, %15 : vector<2x14x128xf32>
    %c0_13 = arith.constant 0 : index
    %c0_14 = arith.constant 0 : index
    %17 = vector.load %arg6[%c0_13, %c0_14] : memref<128x128xf32, #tpu.memory_space<vmem>>, vector<128x128xf32>
    "tpu.trace_start"() <{level = 10 : i32, message = "blc,cd->bld"}> : () -> ()
    %cst_15 = arith.constant dense<0.000000e+00> : vector<2x14x128xf32>
    %18 = tpu.matmul %16, %17, %cst_15 {dimension_numbers = #tpu.dot_dimension_numbers<[2], [0], [0, 1], [1], [0, 0, 0, 1, 1, 1], [], []>} : vector<2x14x128xf32>, vector<128x128xf32>, vector<2x14x128xf32> -> vector<2x14x128xf32>
    "tpu.trace_stop"() : () -> ()
    %c0_16 = arith.constant 0 : index
    %c0_17 = arith.constant 0 : index
    %19 = vector.load %arg7[%c0_16, %c0_17] : memref<1x128xf32, #tpu.memory_space<vmem>>, vector<1x128xf32>
    %20 = vector.shape_cast %19 : vector<1x128xf32> to vector<1x1x128xf32>
    %21 = vector.broadcast %20 : vector<1x1x128xf32> to vector<2x14x128xf32>
    %22 = arith.addf %18, %21 : vector<2x14x128xf32>
    %cst_18 = arith.constant dense<0xFF800000> : vector<2x128xf32>
    %23 = vector.multi_reduction <maximumf>, %22, %cst_18 [1] : vector<2x14x128xf32> to vector<2x128xf32>
    %c0_19 = arith.constant 0 : index
    %c0_20 = arith.constant 0 : index
    %24 = vector.load %arg8[%c0_19, %c0_20] : memref<128x128xf32, #tpu.memory_space<vmem>>, vector<128x128xf32>
    %cst_21 = arith.constant dense<0.000000e+00> : vector<2x128xf32>
    %25 = tpu.matmul %23, %24, %cst_21 {dimension_numbers = #tpu.dot_dimension_numbers<[1], [0], [0], [1], [0, 0, 1, 1], [], []>} : vector<2x128xf32>, vector<128x128xf32>, vector<2x128xf32> -> vector<2x128xf32>
    %c0_22 = arith.constant 0 : index
    %c0_23 = arith.constant 0 : index
    %26 = vector.load %arg9[%c0_22, %c0_23] : memref<1x128xf32, #tpu.memory_space<vmem>>, vector<1x128xf32>
    %27 = vector.broadcast %26 : vector<1x128xf32> to vector<2x128xf32>
    %28 = arith.addf %25, %27 : vector<2x128xf32>
    %cst_24 = arith.constant 0.000000e+00 : f32
    %29 = vector.broadcast %cst_24 : f32 to vector<2x128xf32>
    %30 = arith.maximumf %28, %29 : vector<2x128xf32>
    %c0_25 = arith.constant 0 : index
    %c0_26 = arith.constant 0 : index
    %31 = vector.load %arg10[%c0_25, %c0_26] : memref<128x128xf32, #tpu.memory_space<vmem>>, vector<128x128xf32>
    %cst_27 = arith.constant dense<0.000000e+00> : vector<2x128xf32>
    %32 = tpu.matmul %30, %31, %cst_27 {dimension_numbers = #tpu.dot_dimension_numbers<[1], [0], [0], [1], [0, 0, 1, 1], [], []>} : vector<2x128xf32>, vector<128x128xf32>, vector<2x128xf32> -> vector<2x128xf32>
    %c0_28 = arith.constant 0 : index
    %c0_29 = arith.constant 0 : index
    %33 = vector.load %arg11[%c0_28, %c0_29] : memref<1x128xf32, #tpu.memory_space<vmem>>, vector<1x128xf32>
    %34 = vector.broadcast %33 : vector<1x128xf32> to vector<2x128xf32>
    %35 = arith.addf %32, %34 : vector<2x128xf32>
    %36 = vector.extract_strided_slice %35 {offsets = [0, 0], sizes = [2, 8], strides = [1, 1]} : vector<2x128xf32> to vector<2x8xf32>
    %37 = vector.extract_strided_slice %35 {offsets = [0, 8], sizes = [2, 8], strides = [1, 1]} : vector<2x128xf32> to vector<2x8xf32>
    %c0_30 = arith.constant 0 : index
    %c0_31 = arith.constant 0 : index
    %38 = vector.load %arg1[%c0_30, %c0_31] : memref<2x8xf32, #tpu.memory_space<vmem>>, vector<2x8xf32>
    %cst_32 = arith.constant 5.000000e-01 : f32
    %39 = vector.broadcast %cst_32 : f32 to vector<2x8xf32>
    %40 = arith.mulf %39, %37 : vector<2x8xf32>
    %41 = math.exp %40 : vector<2x8xf32>
    %42 = arith.mulf %38, %41 : vector<2x8xf32>
    %43 = arith.addf %42, %36 : vector<2x8xf32>
    %c0_33 = arith.constant 0 : index
    %c0_34 = arith.constant 0 : index
    %44 = vector.load %arg12[%c0_33, %c0_34] : memref<8x128xf32, #tpu.memory_space<vmem>>, vector<8x128xf32>
    %cst_35 = arith.constant dense<0.000000e+00> : vector<2x128xf32>
    %45 = tpu.matmul %43, %44, %cst_35 {dimension_numbers = #tpu.dot_dimension_numbers<[1], [0], [0], [1], [0, 0, 1, 1], [], []>} : vector<2x8xf32>, vector<8x128xf32>, vector<2x128xf32> -> vector<2x128xf32>
    %c0_36 = arith.constant 0 : index
    %c0_37 = arith.constant 0 : index
    %46 = vector.load %arg13[%c0_36, %c0_37] : memref<1x128xf32, #tpu.memory_space<vmem>>, vector<1x128xf32>
    %47 = vector.broadcast %46 : vector<1x128xf32> to vector<2x128xf32>
    %48 = arith.addf %45, %47 : vector<2x128xf32>
    %cst_38 = arith.constant 0.000000e+00 : f32
    %49 = vector.broadcast %cst_38 : f32 to vector<2x128xf32>
    %50 = arith.maximumf %48, %49 : vector<2x128xf32>
    %c0_39 = arith.constant 0 : index
    %c0_40 = arith.constant 0 : index
    %51 = vector.load %arg14[%c0_39, %c0_40] : memref<128x128xf32, #tpu.memory_space<vmem>>, vector<128x128xf32>
    %cst_41 = arith.constant dense<0.000000e+00> : vector<2x128xf32>
    %52 = tpu.matmul %50, %51, %cst_41 {dimension_numbers = #tpu.dot_dimension_numbers<[1], [0], [0], [1], [0, 0, 1, 1], [], []>} : vector<2x128xf32>, vector<128x128xf32>, vector<2x128xf32> -> vector<2x128xf32>
    %c0_42 = arith.constant 0 : index
    %c0_43 = arith.constant 0 : index
    %53 = vector.load %arg15[%c0_42, %c0_43] : memref<1x128xf32, #tpu.memory_space<vmem>>, vector<1x128xf32>
    %54 = vector.broadcast %53 : vector<1x128xf32> to vector<2x128xf32>
    %55 = arith.addf %52, %54 : vector<2x128xf32>
    %cst_44 = arith.constant 0.000000e+00 : f32
    %56 = vector.broadcast %cst_44 : f32 to vector<2x128xf32>
    %57 = arith.maximumf %55, %56 : vector<2x128xf32>
    %c0_45 = arith.constant 0 : index
    %c0_46 = arith.constant 0 : index
    %58 = vector.load %arg16[%c0_45, %c0_46] : memref<128x64xf32, #tpu.memory_space<vmem>>, vector<128x64xf32>
    %cst_47 = arith.constant dense<0.000000e+00> : vector<2x64xf32>
    %59 = tpu.matmul %57, %58, %cst_47 {dimension_numbers = #tpu.dot_dimension_numbers<[1], [0], [0], [1], [0, 0, 1, 1], [], []>} : vector<2x128xf32>, vector<128x64xf32>, vector<2x64xf32> -> vector<2x64xf32>
    %c0_48 = arith.constant 0 : index
    %c0_49 = arith.constant 0 : index
    %60 = vector.load %arg17[%c0_48, %c0_49] : memref<1x64xf32, #tpu.memory_space<vmem>>, vector<1x64xf32>
    %61 = vector.broadcast %60 : vector<1x64xf32> to vector<2x64xf32>
    %62 = arith.addf %59, %61 : vector<2x64xf32>
    %c0_50 = arith.constant 0 : index
    %c0_51 = arith.constant 0 : index
    %63 = vector.load %arg18[%c0_50, %c0_51] : memref<2x8xf32, #tpu.memory_space<vmem>>, vector<2x8xf32>
    tpu.vector_store %arg18[%c0_50, %c0_51], %43 {strides = array<i32>} : memref<2x8xf32, #tpu.memory_space<vmem>>, vector<2x8xf32>,
    %c0_52 = arith.constant 0 : index
    %c0_53 = arith.constant 0 : index
    %64 = vector.load %arg19[%c0_52, %c0_53] : memref<2x8xf32, #tpu.memory_space<vmem>>, vector<2x8xf32>
    tpu.vector_store %arg19[%c0_52, %c0_53], %36 {strides = array<i32>} : memref<2x8xf32, #tpu.memory_space<vmem>>, vector<2x8xf32>,
    %c0_54 = arith.constant 0 : index
    %c0_55 = arith.constant 0 : index
    %65 = vector.load %arg20[%c0_54, %c0_55] : memref<2x8xf32, #tpu.memory_space<vmem>>, vector<2x8xf32>
    tpu.vector_store %arg20[%c0_54, %c0_55], %37 {strides = array<i32>} : memref<2x8xf32, #tpu.memory_space<vmem>>, vector<2x8xf32>,
    %c0_56 = arith.constant 0 : index
    %c0_57 = arith.constant 0 : index
    %66 = vector.load %arg21[%c0_56, %c0_57] : memref<2x64xf32, #tpu.memory_space<vmem>>, vector<2x64xf32>
    tpu.vector_store %arg21[%c0_56, %c0_57], %62 {strides = array<i32>} : memref<2x64xf32, #tpu.memory_space<vmem>>, vector<2x64xf32>,
    return
  }
}

</mosaic_0001>

<llo_original>
// kernel: _lambda_.1
$region0: #{_lambda_.1}
  #allocation0 [shape = 'u32[]', space=smem, size = 0x4, offset = 0x4, fixed_abs, tag = 'smem constant byte address 0x4 - core index']
  #allocation1 [shape = 'u32[144,128]{1,0:T(1,128)}', space=vmem, size = 0x12000, scoped, tag = 'internal scratch']
  %s0 = inlined_call_operand.vmem [shape: f32[2,14,12], index: 0, kind: input, shape index: {}]
  %s1 = inlined_call_operand.vmem [shape: f32[2,8], index: 1, kind: input, shape index: {}]
  %s2 = inlined_call_operand.hbm [shape: f32[12,128], index: 2, kind: input, shape index: {}]
  %s3 = inlined_call_operand.hbm [shape: f32[1,128], index: 3, kind: input, shape index: {}]
  %s4 = inlined_call_operand.vmem [shape: f32[128,128], index: 4, kind: input, shape index: {}]
  %s5 = inlined_call_operand.hbm [shape: f32[1,128], index: 5, kind: input, shape index: {}]
  %s6 = inlined_call_operand.vmem [shape: f32[128,128], index: 6, kind: input, shape index: {}]
  %s7 = inlined_call_operand.hbm [shape: f32[1,128], index: 7, kind: input, shape index: {}]
  %s8 = inlined_call_operand.vmem [shape: f32[128,128], index: 8, kind: input, shape index: {}]
  %s9 = inlined_call_operand.hbm [shape: f32[1,128], index: 9, kind: input, shape index: {}]
  %s10 = inlined_call_operand.vmem [shape: f32[128,128], index: 10, kind: input, shape index: {}]
  %s11 = inlined_call_operand.hbm [shape: f32[1,128], index: 11, kind: input, shape index: {}]
  %s12 = inlined_call_operand.hbm [shape: f32[8,128], index: 12, kind: input, shape index: {}]
  %s13 = inlined_call_operand.hbm [shape: f32[1,128], index: 13, kind: input, shape index: {}]
  %s14 = inlined_call_operand.hbm [shape: f32[128,128], index: 14, kind: input, shape index: {}]
  %s15 = inlined_call_operand.hbm [shape: f32[1,128], index: 15, kind: input, shape index: {}]
  %s16 = inlined_call_operand.vmem [shape: f32[128,64], index: 16, kind: input, shape index: {}]
  %s17 = inlined_call_operand.hbm [shape: f32[1,64], index: 17, kind: input, shape index: {}]
  %s18 = inlined_call_operand.hbm [shape: f32[2,8], index: 18, kind: output, shape index: {0}]
  %s19 = inlined_call_operand.hbm [shape: f32[2,8], index: 19, kind: output, shape index: {1}]
  %s20 = inlined_call_operand.hbm [shape: f32[2,8], index: 20, kind: output, shape index: {2}]
  %s21 = inlined_call_operand.vmem [shape: f32[2,64], index: 21, kind: output, shape index: {3}]
  %22 = xla_tuple %s18, %s19, %s20, %s21
  %s23 = sld [smem:[#allocation0]]
  $region150: #{_lambda_.1} parent=0
    _
  %s25 = ssub.s32 1, %s23
  %s26 = scalar_select 0, %s25, %s23
  $region1: #{_lambda_.1} parent=0
    #allocation2 [shape = 'u8[8192]{0}', space=vmem, size = 0x2000, scoped, tag = 'input window, operand 2, single buffered']
    #allocation3 [shape = 's32[1]{0}', space=sflag, size = 0x4, scoped, tag = 'scoped memory for _lambda_.1']
    #allocation4 [shape = 's32[1]{0}', space=sflag, size = 0x4, scoped, tag = 'scoped memory for _lambda_.1']
    #allocation5 [shape = 'u8[512]{0}', space=vmem, size = 0x400, scoped, tag = 'input window, operand 3, single buffered']
    #allocation6 [shape = 's32[1]{0}', space=sflag, size = 0x4, scoped, tag = 'scoped memory for _lambda_.1']
    #allocation7 [shape = 'u8[512]{0}', space=vmem, size = 0x400, scoped, tag = 'input window, operand 5, single buffered']
    #allocation8 [shape = 'u8[512]{0}', space=vmem, size = 0x400, scoped, tag = 'input window, operand 7, single buffered']
    #allocation9 [shape = 's32[1]{0}', space=sflag, size = 0x4, scoped, tag = 'scoped memory for _lambda_.1']
    #allocation10 [shape = 'u8[512]{0}', space=vmem, size = 0x400, scoped, tag = 'input window, operand 9, single buffered']
    #allocation11 [shape = 'u8[512]{0}', space=vmem, size = 0x400, scoped, tag = 'input window, operand 11, single buffered']
    #allocation12 [shape = 's32[1]{0}', space=sflag, size = 0x4, scoped, tag = 'scoped memory for _lambda_.1']
    #allocation13 [shape = 'u8[4096]{0}', space=vmem, size = 0x1000, scoped, tag = 'input window, operand 12, single buffered']
    #allocation14 [shape = 'u8[512]{0}', space=vmem, size = 0x400, scoped, tag = 'input window, operand 13, single buffered']
    #allocation15 [shape = 's32[1]{0}', space=sflag, size = 0x4, scoped, tag = 'scoped memory for _lambda_.1']
    #allocation16 [shape = 'u8[65536]{0}', space=vmem, size = 0x10000, scoped, tag = 'input window, operand 14, single buffered']
    #allocation17 [shape = 'u8[512]{0}', space=vmem, size = 0x400, scoped, tag = 'input window, operand 15, single buffered']
    #allocation18 [shape = 's32[1]{0}', space=sflag, size = 0x4, scoped, tag = 'scoped memory for _lambda_.1']
    #allocation19 [shape = 'u8[512]{0}', space=vmem, size = 0x400, scoped, tag = 'input window, operand 17, single buffered']
    #allocation20 [shape = 'u8[1024]{0}', space=vmem, size = 0x400, scoped, tag = 'output window, operand 0, single buffered']
    #allocation21 [shape = 'u8[1024]{0}', space=vmem, size = 0x400, scoped, tag = 'output window, operand 1, single buffered']
    #allocation22 [shape = 's32[1]{0}', space=sflag, size = 0x4, scoped, tag = 'scoped memory for _lambda_.1']
    #allocation23 [shape = 'u8[1024]{0}', space=vmem, size = 0x400, scoped, tag = 'output window, operand 2, single buffered']
    %27 = vsyncpa [#allocation3], 0
    %28 = vsyncpa [#allocation6], 0
    %29 = vsyncpa [#allocation9], 0
    %30 = vsyncpa [#allocation12], 0
    %31 = vsyncpa [#allocation15], 0
    %32 = vsyncpa [#allocation18], 0
    %33 = vsyncpa [#allocation4], 0
    %34 = vsyncpa [#allocation22], 0
    // Predicated region
    $region2: #{_lambda_.1} parent=1 // pred_check
      _
    $region3: #{_lambda_.1} parent=1 // pred_check_branch
      %36 = sbr.rel (0) target = $region5
    $region4: #{_lambda_.1} parent=1 // pred_region
      _
    $region5: #{_lambda_.1} parent=1 // pred_fallthru
      _
    // Predicated region
    $region6: #{_lambda_.1} parent=1 // pred_check
      _
    $region7: #{_lambda_.1} parent=1 // pred_check_branch
      %38 = sbr.rel (0) target = $region9
    $region8: #{_lambda_.1} parent=1 // pred_region
      _
    $region9: #{_lambda_.1} parent=1 // pred_fallthru
      _
    // Predicated region
    $region10: #{_lambda_.1} parent=1 // pred_check
      _
    $region11: #{_lambda_.1} parent=1 // pred_check_branch
      %40 = sbr.rel (0) target = $region13
    $region12: #{_lambda_.1} parent=1 // pred_region
      %s42 = ssub.s32 256, 256
      %43 = vsyncadd [#allocation3], %s42
      %s44 = sshll.u32 [#allocation2], 4
      %s45 = int_to_ptr.vmem [resolvable:$true] %s44
      %50 = dma.hbm_to_vmem [thread:$0]  %s2, 256, %s45, [#allocation3], 128, 128, 8
    $region13: #{_lambda_.1} parent=1 // pred_fallthru
      _
    // Predicated region
    $region14: #{_lambda_.1} parent=1 // pred_check
      _
    $region15: #{_lambda_.1} parent=1 // pred_check_branch
      %52 = sbr.rel (0) target = $region17
    $region16: #{_lambda_.1} parent=1 // pred_region
      %s54 = ssub.s32 16, 16
      %55 = vsyncadd [#allocation6], %s54
      %s57 = sshll.u32 [#allocation5], 4
      %s58 = int_to_ptr.vmem [resolvable:$true] %s57
      %60 = dma.hbm_to_vmem [thread:$0]  %s3, 16, %s58, [#allocation6]
    $region17: #{_lambda_.1} parent=1 // pred_fallthru
      _
    // Predicated region
    $region18: #{_lambda_.1} parent=1 // pred_check
      _
    $region19: #{_lambda_.1} parent=1 // pred_check_branch
      %62 = sbr.rel (0) target = $region21
    $region20: #{_lambda_.1} parent=1 // pred_region
      _
    $region21: #{_lambda_.1} parent=1 // pred_fallthru
      _
    // Predicated region
    $region22: #{_lambda_.1} parent=1 // pred_check
      _
    $region23: #{_lambda_.1} parent=1 // pred_check_branch
      %64 = sbr.rel (0) target = $region25
    $region24: #{_lambda_.1} parent=1 // pred_region
      %s66 = ssub.s32 16, 16
      %67 = vsyncadd [#allocation6], %s66
      %s69 = sshll.u32 [#allocation7], 4
      %s70 = int_to_ptr.vmem [resolvable:$true] %s69
      %72 = dma.hbm_to_vmem [thread:$0]  %s5, 16, %s70, [#allocation6]
    $region25: #{_lambda_.1} parent=1 // pred_fallthru
      _
    // Predicated region
    $region26: #{_lambda_.1} parent=1 // pred_check
      _
    $region27: #{_lambda_.1} parent=1 // pred_check_branch
      %74 = sbr.rel (0) target = $region29
    $region28: #{_lambda_.1} parent=1 // pred_region
      _
    $region29: #{_lambda_.1} parent=1 // pred_fallthru
      _
    // Predicated region
    $region30: #{_lambda_.1} parent=1 // pred_check
      _
    $region31: #{_lambda_.1} parent=1 // pred_check_branch
      %76 = sbr.rel (0) target = $region33
    $region32: #{_lambda_.1} parent=1 // pred_region
      %s78 = ssub.s32 16, 16
      %79 = vsyncadd [#allocation9], %s78
      %s81 = sshll.u32 [#allocation8], 4
      %s82 = int_to_ptr.vmem [resolvable:$true] %s81
      %84 = dma.hbm_to_vmem [thread:$0]  %s7, 16, %s82, [#allocation9]
    $region33: #{_lambda_.1} parent=1 // pred_fallthru
      _
    // Predicated region
    $region34: #{_lambda_.1} parent=1 // pred_check
      _
    $region35: #{_lambda_.1} parent=1 // pred_check_branch
      %86 = sbr.rel (0) target = $region37
    $region36: #{_lambda_.1} parent=1 // pred_region
      _
    $region37: #{_lambda_.1} parent=1 // pred_fallthru
      _
    // Predicated region
    $region38: #{_lambda_.1} parent=1 // pred_check
      _
    $region39: #{_lambda_.1} parent=1 // pred_check_branch
      %88 = sbr.rel (0) target = $region41
    $region40: #{_lambda_.1} parent=1 // pred_region
      %s90 = ssub.s32 16, 16
      %91 = vsyncadd [#allocation9], %s90
      %s93 = sshll.u32 [#allocation10], 4
      %s94 = int_to_ptr.vmem [resolvable:$true] %s93
      %96 = dma.hbm_to_vmem [thread:$0]  %s9, 16, %s94, [#allocation9]
    $region41: #{_lambda_.1} parent=1 // pred_fallthru
      _
    // Predicated region
    $region42: #{_lambda_.1} parent=1 // pred_check
      _
    $region43: #{_lambda_.1} parent=1 // pred_check_branch
      %98 = sbr.rel (0) target = $region45
    $region44: #{_lambda_.1} parent=1 // pred_region
      _
    $region45: #{_lambda_.1} parent=1 // pred_fallthru
      _
    // Predicated region
    $region46: #{_lambda_.1} parent=1 // pred_check
      _
    $region47: #{_lambda_.1} parent=1 // pred_check_branch
      %100 = sbr.rel (0) target = $region49
    $region48: #{_lambda_.1} parent=1 // pred_region
      %s102 = ssub.s32 16, 16
      %103 = vsyncadd [#allocation12], %s102
      %s105 = sshll.u32 [#allocation11], 4
      %s106 = int_to_ptr.vmem [resolvable:$true] %s105
      %108 = dma.hbm_to_vmem [thread:$0]  %s11, 16, %s106, [#allocation12]
    $region49: #{_lambda_.1} parent=1 // pred_fallthru
      _
    // Predicated region
    $region50: #{_lambda_.1} parent=1 // pred_check
      _
    $region51: #{_lambda_.1} parent=1 // pred_check_branch
      %110 = sbr.rel (0) target = $region53
    $region52: #{_lambda_.1} parent=1 // pred_region
      %s112 = ssub.s32 128, 128
      %113 = vsyncadd [#allocation12], %s112
      %s115 = sshll.u32 [#allocation13], 4
      %s116 = int_to_ptr.vmem [resolvable:$true] %s115
      %118 = dma.hbm_to_vmem [thread:$0]  %s12, 128, %s116, [#allocation12]
    $region53: #{_lambda_.1} parent=1 // pred_fallthru
      _
    // Predicated region
    $region54: #{_lambda_.1} parent=1 // pred_check
      _
    $region55: #{_lambda_.1} parent=1 // pred_check_branch
      %120 = sbr.rel (0) target = $region57
    $region56: #{_lambda_.1} parent=1 // pred_region
      %s122 = ssub.s32 16, 16
      %123 = vsyncadd [#allocation15], %s122
      %s125 = sshll.u32 [#allocation14], 4
      %s126 = int_to_ptr.vmem [resolvable:$true] %s125
      %128 = dma.hbm_to_vmem [thread:$0]  %s13, 16, %s126, [#allocation15]
    $region57: #{_lambda_.1} parent=1 // pred_fallthru
      _
    // Predicated region
    $region58: #{_lambda_.1} parent=1 // pred_check
      _
    $region59: #{_lambda_.1} parent=1 // pred_check_branch
      %130 = sbr.rel (0) target = $region61
    $region60: #{_lambda_.1} parent=1 // pred_region
      %s132 = ssub.s32 2048, 2048
      %133 = vsyncadd [#allocation15], %s132
      %s134 = sshll.u32 [#allocation16], 4
      %s135 = int_to_ptr.vmem [resolvable:$true] %s134
      %140 = dma.hbm_to_vmem [thread:$0]  %s14, 2048, %s135, [#allocation15], 128, 128, 8
    $region61: #{_lambda_.1} parent=1 // pred_fallthru
      _
    // Predicated region
    $region62: #{_lambda_.1} parent=1 // pred_check
      _
    $region63: #{_lambda_.1} parent=1 // pred_check_branch
      %142 = sbr.rel (0) target = $region65
    $region64: #{_lambda_.1} parent=1 // pred_region
      %s144 = ssub.s32 16, 16
      %145 = vsyncadd [#allocation18], %s144
      %s147 = sshll.u32 [#allocation17], 4
      %s148 = int_to_ptr.vmem [resolvable:$true] %s147
      %150 = dma.hbm_to_vmem [thread:$0]  %s15, 16, %s148, [#allocation18]
    $region65: #{_lambda_.1} parent=1 // pred_fallthru
      _
    // Predicated region
    $region66: #{_lambda_.1} parent=1 // pred_check
      _
    $region67: #{_lambda_.1} parent=1 // pred_check_branch
      %152 = sbr.rel (0) target = $region69
    $region68: #{_lambda_.1} parent=1 // pred_region
      _
    $region69: #{_lambda_.1} parent=1 // pred_fallthru
      _
    // Predicated region
    $region70: #{_lambda_.1} parent=1 // pred_check
      _
    $region71: #{_lambda_.1} parent=1 // pred_check_branch
      %154 = sbr.rel (0) target = $region73
    $region72: #{_lambda_.1} parent=1 // pred_region
      %s156 = ssub.s32 16, 16
      %157 = vsyncadd [#allocation18], %s156
      %s159 = sshll.u32 [#allocation19], 4
      %s160 = int_to_ptr.vmem [resolvable:$true] %s159
      %162 = dma.hbm_to_vmem [thread:$0]  %s17, 16, %s160, [#allocation18]
    $region73: #{_lambda_.1} parent=1 // pred_fallthru
      _
    // Predicated region
    $region74: #{_lambda_.1} parent=1 // pred_check
      _
    $region75: #{_lambda_.1} parent=1 // pred_check_branch
      %164 = sbr.rel (0) target = $region77
    $region76: #{_lambda_.1} parent=1 // pred_region
      %165 = dma.done [#allocation3], 256
    $region77: #{_lambda_.1} parent=1 // pred_fallthru
      _
    // Predicated region
    $region78: #{_lambda_.1} parent=1 // pred_check
      _
    $region79: #{_lambda_.1} parent=1 // pred_check_branch
      %167 = sbr.rel (0) target = $region81
    $region80: #{_lambda_.1} parent=1 // pred_region
      %168 = dma.done [#allocation6], 16
    $region81: #{_lambda_.1} parent=1 // pred_fallthru
      _
    // Predicated region
    $region82: #{_lambda_.1} parent=1 // pred_check
      _
    $region83: #{_lambda_.1} parent=1 // pred_check_branch
      %170 = sbr.rel (0) target = $region85
    $region84: #{_lambda_.1} parent=1 // pred_region
      %171 = dma.done [#allocation6], 16
    $region85: #{_lambda_.1} parent=1 // pred_fallthru
      _
    // Predicated region
    $region86: #{_lambda_.1} parent=1 // pred_check
      _
    $region87: #{_lambda_.1} parent=1 // pred_check_branch
      %173 = sbr.rel (0) target = $region89
    $region88: #{_lambda_.1} parent=1 // pred_region
      %174 = dma.done [#allocation9], 16
    $region89: #{_lambda_.1} parent=1 // pred_fallthru
      _
    // Predicated region
    $region90: #{_lambda_.1} parent=1 // pred_check
      _
    $region91: #{_lambda_.1} parent=1 // pred_check_branch
      %176 = sbr.rel (0) target = $region93
    $region92: #{_lambda_.1} parent=1 // pred_region
      %177 = dma.done [#allocation9], 16
    $region93: #{_lambda_.1} parent=1 // pred_fallthru
      _
    // Predicated region
    $region94: #{_lambda_.1} parent=1 // pred_check
      _
    $region95: #{_lambda_.1} parent=1 // pred_check_branch
      %179 = sbr.rel (0) target = $region97
    $region96: #{_lambda_.1} parent=1 // pred_region
      %180 = dma.done [#allocation12], 16
    $region97: #{_lambda_.1} parent=1 // pred_fallthru
      _
    // Predicated region
    $region98: #{_lambda_.1} parent=1 // pred_check
      _
    $region99: #{_lambda_.1} parent=1 // pred_check_branch
      %182 = sbr.rel (0) target = $region101
    $region100: #{_lambda_.1} parent=1 // pred_region
      %183 = dma.done [#allocation12], 128
    $region101: #{_lambda_.1} parent=1 // pred_fallthru
      _
    // Predicated region
    $region102: #{_lambda_.1} parent=1 // pred_check
      _
    $region103: #{_lambda_.1} parent=1 // pred_check_branch
      %185 = sbr.rel (0) target = $region105
    $region104: #{_lambda_.1} parent=1 // pred_region
      %186 = dma.done [#allocation15], 16
    $region105: #{_lambda_.1} parent=1 // pred_fallthru
      _
    // Predicated region
    $region106: #{_lambda_.1} parent=1 // pred_check
      _
    $region107: #{_lambda_.1} parent=1 // pred_check_branch
      %188 = sbr.rel (0) target = $region109
    $region108: #{_lambda_.1} parent=1 // pred_region
      %189 = dma.done [#allocation15], 2048
    $region109: #{_lambda_.1} parent=1 // pred_fallthru
      _
    // Predicated region
    $region110: #{_lambda_.1} parent=1 // pred_check
      _
    $region111: #{_lambda_.1} parent=1 // pred_check_branch
      %191 = sbr.rel (0) target = $region113
    $region112: #{_lambda_.1} parent=1 // pred_region
      %192 = dma.done [#allocation18], 16
    $region113: #{_lambda_.1} parent=1 // pred_fallthru
      _
    // Predicated region
    $region114: #{_lambda_.1} parent=1 // pred_check
      _
    $region115: #{_lambda_.1} parent=1 // pred_check_branch
      %194 = sbr.rel (0) target = $region117
    $region116: #{_lambda_.1} parent=1 // pred_region
      %195 = dma.done [#allocation18], 16
    $region117: #{_lambda_.1} parent=1 // pred_fallthru
      _
    %v196 = vld [vmem:[%s0] sm:$0xff]
    %v197 = vld [vmem:[%s0 + $0x8] sm:$0x3f]
    %v198 = vld [vmem:[%s0 + $0x10] sm:$0xff]
    %v199 = vld [vmem:[%s0 + $0x18] sm:$0x3f]
    %v200 = vld [vmem:[#allocation2] sm:$0xff]
    %v201 = vld [vmem:[#allocation2 + $0x8] sm:$0xf]
    %v202 = vld [vmem:[#allocation5] sm:$0x1]
    %v204 = vlaneseq
    %v205 = vshrl.u32 %v204, 7
    %v206 = vsub.s32 0, %v205
    %v207 = vrot.slane %v202, %v206
    %v212 = vcombine.high %v196, %v196
    %v214 = vunpack.c.l.s4 1983009808
    %v215 = vunpack.c.0.s8 %v214
    %v216 = vlaneseq
    %v217 = vshrl.u32 %v216, 7
    %v218 = vsub.s32 %v215, %v217
    %v219 = vrot.slane %v196, %v218
    %v221 = vunpack.c.l.s4 1983009808
    %v222 = vunpack.c.0.s8 %v221
    %v223 = vlaneseq
    %v224 = vshrl.u32 %v223, 7
    %v225 = vsub.s32 %v222, %v224
    %v226 = vrot.slane %v212, %v225
    %v227 = vcombine.high %v219, %v219
    %v228 = vcombine.high %v226, %v226
    %v229 = vcombine.high %v197, %v197
    %v231 = vunpack.c.l.s4 1983009808
    %v232 = vunpack.c.0.s8 %v231
    %v233 = vlaneseq
    %v234 = vshrl.u32 %v233, 7
    %v235 = vsub.s32 %v232, %v234
    %v236 = vrot.slane %v197, %v235
    %v238 = vunpack.c.l.s4 1983009808
    %v239 = vunpack.c.0.s8 %v238
    %v240 = vlaneseq
    %v241 = vshrl.u32 %v240, 7
    %v242 = vsub.s32 %v239, %v241
    %v243 = vrot.slane %v229, %v242
    %v244 = vcombine.high %v236, %v236
    %v245 = vcombine.high %v198, %v198
    %v247 = vunpack.c.l.s4 1983009808
    %v248 = vunpack.c.0.s8 %v247
    %v249 = vlaneseq
    %v250 = vshrl.u32 %v249, 7
    %v251 = vsub.s32 %v248, %v250
    %v252 = vrot.slane %v198, %v251
    %v254 = vunpack.c.l.s4 1983009808
    %v255 = vunpack.c.0.s8 %v254
    %v256 = vlaneseq
    %v257 = vshrl.u32 %v256, 7
    %v258 = vsub.s32 %v255, %v257
    %v259 = vrot.slane %v245, %v258
    %v260 = vcombine.high %v252, %v252
    %v261 = vcombine.high %v259, %v259
    %v262 = vcombine.high %v199, %v199
    %v264 = vunpack.c.l.s4 1983009808
    %v265 = vunpack.c.0.s8 %v264
    %v266 = vlaneseq
    %v267 = vshrl.u32 %v266, 7
    %v268 = vsub.s32 %v265, %v267
    %v269 = vrot.slane %v199, %v268
    %v271 = vunpack.c.l.s4 1983009808
    %v272 = vunpack.c.0.s8 %v271
    %v273 = vlaneseq
    %v274 = vshrl.u32 %v273, 7
    %v275 = vsub.s32 %v272, %v274
    %v276 = vrot.slane %v262, %v275
    %v277 = vcombine.high %v269, %v269
    %v278 = vcombine.high %v207, %v207
    %v280 = vunpack.c.l.s4 1983009808
    %v281 = vunpack.c.0.s8 %v280
    %v282 = vlaneseq
    %v283 = vshrl.u32 %v282, 7
    %v284 = vsub.s32 %v281, %v283
    %v285 = vrot.slane %v207, %v284
    %v287 = vunpack.c.l.s4 1983009808
    %v288 = vunpack.c.0.s8 %v287
    %v289 = vlaneseq
    %v290 = vshrl.u32 %v289, 7
    %v291 = vsub.s32 %v288, %v290
    %v292 = vrot.slane %v278, %v291
    %v293 = vcombine.high %v285, %v285
    %v294 = vcombine.high %v292, %v292
    %v295 = vcombine.low %v219, %v227
    %v296 = vcombine.low %v226, %v228
    %v298 = vunpack.c.l.s4 1983009808
    %v299 = vunpack.c.0.s8 %v298
    %v300 = vlaneseq
    %v301 = vshrl.u32 %v300, 7
    %v302 = vsub.s32 %v299, %v301
    %v303 = vrot.slane %v295, %v302
    %v305 = vunpack.c.l.s4 1983009808
    %v306 = vunpack.c.0.s8 %v305
    %v307 = vlaneseq
    %v308 = vshrl.u32 %v307, 7
    %v309 = vsub.s32 %v306, %v308
    %v310 = vrot.slane %v296, %v309
    %v311 = vcombine.low %v303, %v310
    %v312 = vcombine.low %v236, %v244
    %v313 = vcombine.low %v243, %v252
    %v315 = vunpack.c.l.s4 1983009808
    %v316 = vunpack.c.0.s8 %v315
    %v317 = vlaneseq
    %v318 = vshrl.u32 %v317, 7
    %v319 = vsub.s32 %v316, %v318
    %v320 = vrot.slane %v312, %v319
    %v322 = vunpack.c.l.s4 1983009808
    %v323 = vunpack.c.0.s8 %v322
    %v324 = vlaneseq
    %v325 = vshrl.u32 %v324, 7
    %v326 = vsub.s32 %v323, %v325
    %v327 = vrot.slane %v313, %v326
    %v328 = vcombine.low %v320, %v327
    %v329 = vcombine.low %v260, %v259
    %v330 = vcombine.low %v261, %v269
    %v332 = vunpack.c.l.s4 1983009808
    %v333 = vunpack.c.0.s8 %v332
    %v334 = vlaneseq
    %v335 = vshrl.u32 %v334, 7
    %v336 = vsub.s32 %v333, %v335
    %v337 = vrot.slane %v329, %v336
    %v339 = vunpack.c.l.s4 1983009808
    %v340 = vunpack.c.0.s8 %v339
    %v341 = vlaneseq
    %v342 = vshrl.u32 %v341, 7
    %v343 = vsub.s32 %v340, %v342
    %v344 = vrot.slane %v330, %v343
    %v345 = vcombine.low %v337, %v344
    %v346 = vcombine.low %v277, %v276
    %v348 = vunpack.c.l.s4 1983009808
    %v349 = vunpack.c.0.s8 %v348
    %v350 = vlaneseq
    %v351 = vshrl.u32 %v350, 7
    %v352 = vsub.s32 %v349, %v351
    %v353 = vrot.slane %v346, %v352
    %v354 = vcombine.low %v285, %v293
    %v355 = vcombine.low %v292, %v294
    %v357 = vunpack.c.l.s4 1983009808
    %v358 = vunpack.c.0.s8 %v357
    %v359 = vlaneseq
    %v360 = vshrl.u32 %v359, 7
    %v361 = vsub.s32 %v358, %v360
    %v362 = vrot.slane %v354, %v361
    %v364 = vunpack.c.l.s4 1983009808
    %v365 = vunpack.c.0.s8 %v364
    %v366 = vlaneseq
    %v367 = vshrl.u32 %v366, 7
    %v368 = vsub.s32 %v365, %v367
    %v369 = vrot.slane %v355, %v368
    %v370 = vcombine.low %v362, %v369
    %v371 = vcombine.low %v292, %v285
    %v373 = vunpack.c.l.s4 1983009808
    %v374 = vunpack.c.0.s8 %v373
    %v375 = vlaneseq
    %v376 = vshrl.u32 %v375, 7
    %v377 = vsub.s32 %v374, %v376
    %v378 = vrot.slane %v371, %v377
    %v379 = vcombine.low %v362, %v378
    %v380 = vcombine.low %v293, %v292
    %v381 = vcombine.low %v294, %v285
    %v383 = vunpack.c.l.s4 1983009808
    %v384 = vunpack.c.0.s8 %v383
    %v385 = vlaneseq
    %v386 = vshrl.u32 %v385, 7
    %v387 = vsub.s32 %v384, %v386
    %v388 = vrot.slane %v380, %v387
    %v390 = vunpack.c.l.s4 1983009808
    %v391 = vunpack.c.0.s8 %v390
    %v392 = vlaneseq
    %v393 = vshrl.u32 %v392, 7
    %v394 = vsub.s32 %v391, %v393
    %v395 = vrot.slane %v381, %v394
    %v396 = vcombine.low %v388, %v395
    %vm401 = vcmask 97280
    %v402 = vsel %vm401, %v311, 0
    %v404 = vsel %vm401, %v328, 0
    %v406 = vsel %vm401, %v345, 0
    %v408 = vsel %vm401, %v353, 0
    %vm410 = vcmask 1043456
    %v412 = vsel %vm410, %v201, 0
    %414 = vmatprep.subr.mxu0 0.0
    %415 = vmatpush1.msra.mxu0 0.0
    %416 = vmatprep.subr.mxu0 0.0
    %417 = vmatpush1.msra.mxu0 0.0
    %418 = vmatprep.subr.mxu0 0.0
    %419 = vmatpush1.msra.mxu0 0.0
    %420 = vmatprep.subr.mxu0 0.0
    %421 = vmatpush1.msra.mxu0 0.0
    %422 = vmatprep.subr.mxu0 0.0
    %423 = vmatpush1.msra.mxu0 0.0
    %424 = vmatprep.subr.mxu0 0.0
    %425 = vmatpush1.msra.mxu0 0.0
    %426 = vmatprep.subr.mxu0 0.0
    %427 = vmatpush1.msra.mxu0 0.0
    %428 = vmatprep.subr.mxu0 0.0
    %429 = vmatpush1.msra.mxu0 0.0
    %430 = vmatprep.subr.mxu0 0.0
    %431 = vmatpush1.msra.mxu0 0.0
    %432 = vmatprep.subr.mxu0 0.0
    %433 = vmatpush1.msra.mxu0 0.0
    %434 = vmatprep.subr.mxu0 0.0
    %435 = vmatpush1.msra.mxu0 0.0
    %436 = vmatprep.subr.mxu0 0.0
    %437 = vmatpush1.msra.mxu0 0.0
    %438 = vmatprep.subr.mxu0 0.0
    %439 = vmatpush1.msra.mxu0 0.0
    %440 = vmatprep.subr.mxu0 0.0
    %441 = vmatpush1.msra.mxu0 0.0
    %442 = vmatprep.subr.mxu0 0.0
    %443 = vmatpush1.msra.mxu0 %v412
    %444 = vmatprep.subr.mxu0 0.0
    %445 = vmatpush1.msra.mxu0 %v200
    %446 = vmatprep.subr.mxu0 0.0
    %447 = vmatpush2.msra.mxu0 0.0
    %448 = vmatprep.subr.mxu0 0.0
    %449 = vmatpush2.msra.mxu0 0.0
    %450 = vmatprep.subr.mxu0 0.0
    %451 = vmatpush2.msra.mxu0 0.0
    %452 = vmatprep.subr.mxu0 0.0
    %453 = vmatpush2.msra.mxu0 0.0
    %454 = vmatprep.subr.mxu0 0.0
    %455 = vmatpush2.msra.mxu0 0.0
    %456 = vmatprep.subr.mxu0 0.0
    %457 = vmatpush2.msra.mxu0 0.0
    %458 = vmatprep.subr.mxu0 0.0
    %459 = vmatpush2.msra.mxu0 0.0
    %460 = vmatprep.subr.mxu0 0.0
    %461 = vmatpush2.msra.mxu0 0.0
    %462 = vmatprep.subr.mxu0 0.0
    %463 = vmatpush2.msra.mxu0 0.0
    %464 = vmatprep.subr.mxu0 0.0
    %465 = vmatpush2.msra.mxu0 0.0
    %466 = vmatprep.subr.mxu0 0.0
    %467 = vmatpush2.msra.mxu0 0.0
    %468 = vmatprep.subr.mxu0 0.0
    %469 = vmatpush2.msra.mxu0 0.0
    %470 = vmatprep.subr.mxu0 0.0
    %471 = vmatpush2.msra.mxu0 0.0
    %472 = vmatprep.subr.mxu0 0.0
    %473 = vmatpush2.msra.mxu0 0.0
    %474 = vmatprep.subr.mxu0 0.0
    %475 = vmatpush2.msra.mxu0 0.0
    %476 = vmatprep.subr.mxu0 0.0
    %477 = vmatpush2.msra.mxu0 0.0
    %478 = vmatprep.mubr.f32.mxu0 0.0
    %479 = vmatmul.mubr.f32.gmra.mxu0 %v402
    %v480 = vpop.f32.mrf.mxu0
    %v481 = vadd.f32 %v370, %v480
    %v482 = vpop.f32.mrf.mxu0
    %483 = vmatprep.mubr.f32.mxu0 0.0
    %484 = vmatmul.mubr.f32.gmra.mxu0 %v404
    %v485 = vpop.f32.mrf.mxu0
    %v486 = vadd.f32 %v379, %v485
    %v487 = vpop.f32.mrf.mxu0
    %488 = vmatprep.mubr.f32.mxu0 0.0
    %489 = vmatmul.mubr.f32.gmra.mxu0 %v406
    %v490 = vpop.f32.mrf.mxu0
    %v491 = vadd.f32 %v396, %v490
    %v492 = vpop.f32.mrf.mxu0
    %493 = vmatprep.mubr.f32.mxu0 0.0
    %494 = vmatmul.mubr.f32.gmra.mxu0 %v408
    %v495 = vpop.f32.mrf.mxu0
    %v496 = vadd.f32 %v388, %v495
    %v497 = vpop.f32.mrf.mxu0
    %498 = vdwg.mxu0
    %v503 = vcombine.high %v481, %v481
    %v505 = vunpack.c.l.s4 1983009808
    %v506 = vunpack.c.0.s8 %v505
    %v507 = vlaneseq
    %v508 = vshrl.u32 %v507, 7
    %v509 = vsub.s32 %v506, %v508
    %v510 = vrot.slane %v481, %v509
    %v512 = vunpack.c.l.s4 1983009808
    %v513 = vunpack.c.0.s8 %v512
    %v514 = vlaneseq
    %v515 = vshrl.u32 %v514, 7
    %v516 = vsub.s32 %v513, %v515
    %v517 = vrot.slane %v503, %v516
    %v518 = vcombine.high %v510, %v510
    %v519 = vcombine.high %v517, %v517
    %v520 = vcombine.high %v486, %v486
    %v522 = vunpack.c.l.s4 1983009808
    %v523 = vunpack.c.0.s8 %v522
    %v524 = vlaneseq
    %v525 = vshrl.u32 %v524, 7
    %v526 = vsub.s32 %v523, %v525
    %v527 = vrot.slane %v486, %v526
    %v529 = vunpack.c.l.s4 1983009808
    %v530 = vunpack.c.0.s8 %v529
    %v531 = vlaneseq
    %v532 = vshrl.u32 %v531, 7
    %v533 = vsub.s32 %v530, %v532
    %v534 = vrot.slane %v520, %v533
    %v535 = vcombine.high %v527, %v527
    %v536 = vcombine.high %v534, %v534
    %v537 = vcombine.high %v491, %v491
    %v539 = vunpack.c.l.s4 1983009808
    %v540 = vunpack.c.0.s8 %v539
    %v541 = vlaneseq
    %v542 = vshrl.u32 %v541, 7
    %v543 = vsub.s32 %v540, %v542
    %v544 = vrot.slane %v491, %v543
    %v546 = vunpack.c.l.s4 1983009808
    %v547 = vunpack.c.0.s8 %v546
    %v548 = vlaneseq
    %v549 = vshrl.u32 %v548, 7
    %v550 = vsub.s32 %v547, %v549
    %v551 = vrot.slane %v537, %v550
    %v552 = vcombine.high %v544, %v544
    %v553 = vcombine.high %v551, %v551
    %v555 = vunpack.c.l.s4 1983009808
    %v556 = vunpack.c.0.s8 %v555
    %v557 = vlaneseq
    %v558 = vshrl.u32 %v557, 7
    %v559 = vsub.s32 %v556, %v558
    %v560 = vrot.slane %v496, %v559
    %v561 = vcombine.high %v560, %v560
    %v576 = vmax.f32 %v510, 0.0
    %v577 = vmax.f32 %v518, 0.0
    %v578 = vmax.f32 %v517, 0.0
    %v579 = vmax.f32 %v519, 0.0
    %v580 = vmax.f32 %v527, 0.0
    %v581 = vmax.f32 %v535, 0.0
    %v582 = vmax.f32 %v534, 0.0
    %v583 = vmax.f32 %v536, 0.0
    %v584 = vmax.f32 %v544, 0.0
    %v585 = vmax.f32 %v552, 0.0
    %v586 = vmax.f32 %v551, 0.0
    %v587 = vmax.f32 %v553, 0.0
    %v588 = vmax.f32 %v560, 0.0
    %v589 = vmax.f32 %v561, 0.0
    %v590 = vld [vmem:[%s4] sm:$0xff]
    %v591 = vld [vmem:[%s4 + $0x8] sm:$0xff]
    %v592 = vld [vmem:[%s4 + $0x10] sm:$0xff]
    %v593 = vld [vmem:[%s4 + $0x18] sm:$0xff]
    %v594 = vld [vmem:[%s4 + $0x20] sm:$0xff]
    %v595 = vld [vmem:[%s4 + $0x28] sm:$0xff]
    %v596 = vld [vmem:[%s4 + $0x30] sm:$0xff]
    %v597 = vld [vmem:[%s4 + $0x38] sm:$0xff]
    %v598 = vld [vmem:[%s4 + $0x40] sm:$0xff]
    %v599 = vld [vmem:[%s4 + $0x48] sm:$0xff]
    %v600 = vld [vmem:[%s4 + $0x50] sm:$0xff]
    %v601 = vld [vmem:[%s4 + $0x58] sm:$0xff]
    %v602 = vld [vmem:[%s4 + $0x60] sm:$0xff]
    %v603 = vld [vmem:[%s4 + $0x68] sm:$0xff]
    %v604 = vld [vmem:[%s4 + $0x70] sm:$0xff]
    %v605 = vld [vmem:[%s4 + $0x78] sm:$0xff]
    %v606 = vld [vmem:[#allocation7] sm:$0x1]
    %v608 = vlaneseq
    %v609 = vshrl.u32 %v608, 7
    %v610 = vsub.s32 0, %v609
    %v611 = vrot.slane %v606, %v610
    %v612 = vcombine.high %v611, %v611
    %v614 = vunpack.c.l.s4 1983009808
    %v615 = vunpack.c.0.s8 %v614
    %v616 = vlaneseq
    %v617 = vshrl.u32 %v616, 7
    %v618 = vsub.s32 %v615, %v617
    %v619 = vrot.slane %v611, %v618
    %v621 = vunpack.c.l.s4 1983009808
    %v622 = vunpack.c.0.s8 %v621
    %v623 = vlaneseq
    %v624 = vshrl.u32 %v623, 7
    %v625 = vsub.s32 %v622, %v624
    %v626 = vrot.slane %v612, %v625
    %v627 = vcombine.high %v619, %v619
    %v628 = vcombine.high %v626, %v626
    %v643 = vcombine.low %v576, %v577
    %v644 = vcombine.low %v578, %v579
    %v646 = vunpack.c.l.s4 1983009808
    %v647 = vunpack.c.0.s8 %v646
    %v648 = vlaneseq
    %v649 = vshrl.u32 %v648, 7
    %v650 = vsub.s32 %v647, %v649
    %v651 = vrot.slane %v643, %v650
    %v653 = vunpack.c.l.s4 1983009808
    %v654 = vunpack.c.0.s8 %v653
    %v655 = vlaneseq
    %v656 = vshrl.u32 %v655, 7
    %v657 = vsub.s32 %v654, %v656
    %v658 = vrot.slane %v644, %v657
    %v659 = vcombine.low %v651, %v658
    %v660 = vcombine.low %v580, %v581
    %v661 = vcombine.low %v582, %v583
    %v663 = vunpack.c.l.s4 1983009808
    %v664 = vunpack.c.0.s8 %v663
    %v665 = vlaneseq
    %v666 = vshrl.u32 %v665, 7
    %v667 = vsub.s32 %v664, %v666
    %v668 = vrot.slane %v660, %v667
    %v670 = vunpack.c.l.s4 1983009808
    %v671 = vunpack.c.0.s8 %v670
    %v672 = vlaneseq
    %v673 = vshrl.u32 %v672, 7
    %v674 = vsub.s32 %v671, %v673
    %v675 = vrot.slane %v661, %v674
    %v676 = vcombine.low %v668, %v675
    %v677 = vcombine.low %v584, %v585
    %v678 = vcombine.low %v586, %v587
    %v680 = vunpack.c.l.s4 1983009808
    %v681 = vunpack.c.0.s8 %v680
    %v682 = vlaneseq
    %v683 = vshrl.u32 %v682, 7
    %v684 = vsub.s32 %v681, %v683
    %v685 = vrot.slane %v677, %v684
    %v687 = vunpack.c.l.s4 1983009808
    %v688 = vunpack.c.0.s8 %v687
    %v689 = vlaneseq
    %v690 = vshrl.u32 %v689, 7
    %v691 = vsub.s32 %v688, %v690
    %v692 = vrot.slane %v678, %v691
    %v693 = vcombine.low %v685, %v692
    %v694 = vcombine.low %v588, %v589
    %v696 = vunpack.c.l.s4 1983009808
    %v697 = vunpack.c.0.s8 %v696
    %v698 = vlaneseq
    %v699 = vshrl.u32 %v698, 7
    %v700 = vsub.s32 %v697, %v699
    %v701 = vrot.slane %v694, %v700
    %v706 = vcombine.low %v619, %v627
    %v707 = vcombine.low %v626, %v628
    %v709 = vunpack.c.l.s4 1983009808
    %v710 = vunpack.c.0.s8 %v709
    %v711 = vlaneseq
    %v712 = vshrl.u32 %v711, 7
    %v713 = vsub.s32 %v710, %v712
    %v714 = vrot.slane %v706, %v713
    %v716 = vunpack.c.l.s4 1983009808
    %v717 = vunpack.c.0.s8 %v716
    %v718 = vlaneseq
    %v719 = vshrl.u32 %v718, 7
    %v720 = vsub.s32 %v717, %v719
    %v721 = vrot.slane %v707, %v720
    %v722 = vcombine.low %v714, %v721
    %v723 = vcombine.low %v626, %v619
    %v725 = vunpack.c.l.s4 1983009808
    %v726 = vunpack.c.0.s8 %v725
    %v727 = vlaneseq
    %v728 = vshrl.u32 %v727, 7
    %v729 = vsub.s32 %v726, %v728
    %v730 = vrot.slane %v723, %v729
    %v731 = vcombine.low %v714, %v730
    %v732 = vcombine.low %v627, %v626
    %v733 = vcombine.low %v628, %v619
    %v735 = vunpack.c.l.s4 1983009808
    %v736 = vunpack.c.0.s8 %v735
    %v737 = vlaneseq
    %v738 = vshrl.u32 %v737, 7
    %v739 = vsub.s32 %v736, %v738
    %v740 = vrot.slane %v732, %v739
    %v742 = vunpack.c.l.s4 1983009808
    %v743 = vunpack.c.0.s8 %v742
    %v744 = vlaneseq
    %v745 = vshrl.u32 %v744, 7
    %v746 = vsub.s32 %v743, %v745
    %v747 = vrot.slane %v733, %v746
    %v748 = vcombine.low %v740, %v747
    %753 = vmatprep.subr.mxu0 0.0
    %754 = vmatpush1.msra.mxu0 %v605
    %755 = vmatprep.subr.mxu0 0.0
    %756 = vmatpush1.msra.mxu0 %v604
    %757 = vmatprep.subr.mxu0 0.0
    %758 = vmatpush1.msra.mxu0 %v603
    %759 = vmatprep.subr.mxu0 0.0
    %760 = vmatpush1.msra.mxu0 %v602
    %761 = vmatprep.subr.mxu0 0.0
    %762 = vmatpush1.msra.mxu0 %v601
    %763 = vmatprep.subr.mxu0 0.0
    %764 = vmatpush1.msra.mxu0 %v600
    %765 = vmatprep.subr.mxu0 0.0
    %766 = vmatpush1.msra.mxu0 %v599
    %767 = vmatprep.subr.mxu0 0.0
    %768 = vmatpush1.msra.mxu0 %v598
    %769 = vmatprep.subr.mxu0 0.0
    %770 = vmatpush1.msra.mxu0 %v597
    %771 = vmatprep.subr.mxu0 0.0
    %772 = vmatpush1.msra.mxu0 %v596
    %773 = vmatprep.subr.mxu0 0.0
    %774 = vmatpush1.msra.mxu0 %v595
    %775 = vmatprep.subr.mxu0 0.0
    %776 = vmatpush1.msra.mxu0 %v594
    %777 = vmatprep.subr.mxu0 0.0
    %778 = vmatpush1.msra.mxu0 %v593
    %779 = vmatprep.subr.mxu0 0.0
    %780 = vmatpush1.msra.mxu0 %v592
    %781 = vmatprep.subr.mxu0 0.0
    %782 = vmatpush1.msra.mxu0 %v591
    %783 = vmatprep.subr.mxu0 0.0
    %784 = vmatpush1.msra.mxu0 %v590
    %785 = vmatprep.subr.mxu0 0.0
    %786 = vmatpush2.msra.mxu0 0.0
    %787 = vmatprep.subr.mxu0 0.0
    %788 = vmatpush2.msra.mxu0 0.0
    %789 = vmatprep.subr.mxu0 0.0
    %790 = vmatpush2.msra.mxu0 0.0
    %791 = vmatprep.subr.mxu0 0.0
    %792 = vmatpush2.msra.mxu0 0.0
    %793 = vmatprep.subr.mxu0 0.0
    %794 = vmatpush2.msra.mxu0 0.0
    %795 = vmatprep.subr.mxu0 0.0
    %796 = vmatpush2.msra.mxu0 0.0
    %797 = vmatprep.subr.mxu0 0.0
    %798 = vmatpush2.msra.mxu0 0.0
    %799 = vmatprep.subr.mxu0 0.0
    %800 = vmatpush2.msra.mxu0 0.0
    %801 = vmatprep.subr.mxu0 0.0
    %802 = vmatpush2.msra.mxu0 0.0
    %803 = vmatprep.subr.mxu0 0.0
    %804 = vmatpush2.msra.mxu0 0.0
    %805 = vmatprep.subr.mxu0 0.0
    %806 = vmatpush2.msra.mxu0 0.0
    %807 = vmatprep.subr.mxu0 0.0
    %808 = vmatpush2.msra.mxu0 0.0
    %809 = vmatprep.subr.mxu0 0.0
    %810 = vmatpush2.msra.mxu0 0.0
    %811 = vmatprep.subr.mxu0 0.0
    %812 = vmatpush2.msra.mxu0 0.0
    %813 = vmatprep.subr.mxu0 0.0
    %814 = vmatpush2.msra.mxu0 0.0
    %815 = vmatprep.subr.mxu0 0.0
    %816 = vmatpush2.msra.mxu0 0.0
    %817 = vmatprep.mubr.f32.mxu0 0.0
    %818 = vmatmul.mubr.f32.gmra.mxu0 %v659
    %v819 = vpop.f32.mrf.mxu0
    %v820 = vadd.f32 %v722, %v819
    %v821 = vpop.f32.mrf.mxu0
    %822 = vmatprep.mubr.f32.mxu0 0.0
    %823 = vmatmul.mubr.f32.gmra.mxu0 %v676
    %v824 = vpop.f32.mrf.mxu0
    %v825 = vadd.f32 %v731, %v824
    %v826 = vpop.f32.mrf.mxu0
    %827 = vmatprep.mubr.f32.mxu0 0.0
    %828 = vmatmul.mubr.f32.gmra.mxu0 %v693
    %v829 = vpop.f32.mrf.mxu0
    %v830 = vadd.f32 %v748, %v829
    %v831 = vpop.f32.mrf.mxu0
    %832 = vmatprep.mubr.f32.mxu0 0.0
    %833 = vmatmul.mubr.f32.gmra.mxu0 %v701
    %v834 = vpop.f32.mrf.mxu0
    %v835 = vadd.f32 %v740, %v834
    %v836 = vpop.f32.mrf.mxu0
    %837 = vdwg.mxu0
    %v842 = vcombine.high %v820, %v820
    %v844 = vunpack.c.l.s4 1983009808
    %v845 = vunpack.c.0.s8 %v844
    %v846 = vlaneseq
    %v847 = vshrl.u32 %v846, 7
    %v848 = vsub.s32 %v845, %v847
    %v849 = vrot.slane %v820, %v848
    %v851 = vunpack.c.l.s4 1983009808
    %v852 = vunpack.c.0.s8 %v851
    %v853 = vlaneseq
    %v854 = vshrl.u32 %v853, 7
    %v855 = vsub.s32 %v852, %v854
    %v856 = vrot.slane %v842, %v855
    %v857 = vcombine.high %v849, %v849
    %v858 = vcombine.high %v856, %v856
    %v859 = vcombine.high %v825, %v825
    %v861 = vunpack.c.l.s4 1983009808
    %v862 = vunpack.c.0.s8 %v861
    %v863 = vlaneseq
    %v864 = vshrl.u32 %v863, 7
    %v865 = vsub.s32 %v862, %v864
    %v866 = vrot.slane %v825, %v865
    %v868 = vunpack.c.l.s4 1983009808
    %v869 = vunpack.c.0.s8 %v868
    %v870 = vlaneseq
    %v871 = vshrl.u32 %v870, 7
    %v872 = vsub.s32 %v869, %v871
    %v873 = vrot.slane %v859, %v872
    %v874 = vcombine.high %v866, %v866
    %v875 = vcombine.high %v873, %v873
    %v876 = vcombine.high %v830, %v830
    %v878 = vunpack.c.l.s4 1983009808
    %v879 = vunpack.c.0.s8 %v878
    %v880 = vlaneseq
    %v881 = vshrl.u32 %v880, 7
    %v882 = vsub.s32 %v879, %v881
    %v883 = vrot.slane %v830, %v882
    %v885 = vunpack.c.l.s4 1983009808
    %v886 = vunpack.c.0.s8 %v885
    %v887 = vlaneseq
    %v888 = vshrl.u32 %v887, 7
    %v889 = vsub.s32 %v886, %v888
    %v890 = vrot.slane %v876, %v889
    %v891 = vcombine.high %v883, %v883
    %v892 = vcombine.high %v890, %v890
    %v894 = vunpack.c.l.s4 1983009808
    %v895 = vunpack.c.0.s8 %v894
    %v896 = vlaneseq
    %v897 = vshrl.u32 %v896, 7
    %v898 = vsub.s32 %v895, %v897
    %v899 = vrot.slane %v835, %v898
    %v900 = vcombine.high %v899, %v899
    %v915 = vmax.f32 %v849, 0.0
    %v916 = vmax.f32 %v857, 0.0
    %v917 = vmax.f32 %v856, 0.0
    %v918 = vmax.f32 %v858, 0.0
    %v919 = vmax.f32 %v866, 0.0
    %v920 = vmax.f32 %v874, 0.0
    %v921 = vmax.f32 %v873, 0.0
    %v922 = vmax.f32 %v875, 0.0
    %v923 = vmax.f32 %v883, 0.0
    %v924 = vmax.f32 %v891, 0.0
    %v925 = vmax.f32 %v890, 0.0
    %v926 = vmax.f32 %v892, 0.0
    %v927 = vmax.f32 %v899, 0.0
    %v928 = vmax.f32 %v900, 0.0
    %v929 = vld [vmem:[%s6] sm:$0xff]
    %v930 = vld [vmem:[%s6 + $0x8] sm:$0xff]
    %v931 = vld [vmem:[%s6 + $0x10] sm:$0xff]
    %v932 = vld [vmem:[%s6 + $0x18] sm:$0xff]
    %v933 = vld [vmem:[%s6 + $0x20] sm:$0xff]
    %v934 = vld [vmem:[%s6 + $0x28] sm:$0xff]
    %v935 = vld [vmem:[%s6 + $0x30] sm:$0xff]
    %v936 = vld [vmem:[%s6 + $0x38] sm:$0xff]
    %v937 = vld [vmem:[%s6 + $0x40] sm:$0xff]
    %v938 = vld [vmem:[%s6 + $0x48] sm:$0xff]
    %v939 = vld [vmem:[%s6 + $0x50] sm:$0xff]
    %v940 = vld [vmem:[%s6 + $0x58] sm:$0xff]
    %v941 = vld [vmem:[%s6 + $0x60] sm:$0xff]
    %v942 = vld [vmem:[%s6 + $0x68] sm:$0xff]
    %v943 = vld [vmem:[%s6 + $0x70] sm:$0xff]
    %v944 = vld [vmem:[%s6 + $0x78] sm:$0xff]
    %v945 = vld [vmem:[#allocation8] sm:$0x1]
    %v947 = vlaneseq
    %v948 = vshrl.u32 %v947, 7
    %v949 = vsub.s32 0, %v948
    %v950 = vrot.slane %v945, %v949
    %v951 = vcombine.high %v950, %v950
    %v953 = vunpack.c.l.s4 1983009808
    %v954 = vunpack.c.0.s8 %v953
    %v955 = vlaneseq
    %v956 = vshrl.u32 %v955, 7
    %v957 = vsub.s32 %v954, %v956
    %v958 = vrot.slane %v950, %v957
    %v960 = vunpack.c.l.s4 1983009808
    %v961 = vunpack.c.0.s8 %v960
    %v962 = vlaneseq
    %v963 = vshrl.u32 %v962, 7
    %v964 = vsub.s32 %v961, %v963
    %v965 = vrot.slane %v951, %v964
    %v966 = vcombine.high %v958, %v958
    %v967 = vcombine.high %v965, %v965
    %v982 = vcombine.low %v915, %v916
    %v983 = vcombine.low %v917, %v918
    %v985 = vunpack.c.l.s4 1983009808
    %v986 = vunpack.c.0.s8 %v985
    %v987 = vlaneseq
    %v988 = vshrl.u32 %v987, 7
    %v989 = vsub.s32 %v986, %v988
    %v990 = vrot.slane %v982, %v989
    %v992 = vunpack.c.l.s4 1983009808
    %v993 = vunpack.c.0.s8 %v992
    %v994 = vlaneseq
    %v995 = vshrl.u32 %v994, 7
    %v996 = vsub.s32 %v993, %v995
    %v997 = vrot.slane %v983, %v996
    %v998 = vcombine.low %v990, %v997
    %v999 = vcombine.low %v919, %v920
    %v1000 = vcombine.low %v921, %v922
    %v1002 = vunpack.c.l.s4 1983009808
    %v1003 = vunpack.c.0.s8 %v1002
    %v1004 = vlaneseq
    %v1005 = vshrl.u32 %v1004, 7
    %v1006 = vsub.s32 %v1003, %v1005
    %v1007 = vrot.slane %v999, %v1006
    %v1009 = vunpack.c.l.s4 1983009808
    %v1010 = vunpack.c.0.s8 %v1009
    %v1011 = vlaneseq
    %v1012 = vshrl.u32 %v1011, 7
    %v1013 = vsub.s32 %v1010, %v1012
    %v1014 = vrot.slane %v1000, %v1013
    %v1015 = vcombine.low %v1007, %v1014
    %v1016 = vcombine.low %v923, %v924
    %v1017 = vcombine.low %v925, %v926
    %v1019 = vunpack.c.l.s4 1983009808
    %v1020 = vunpack.c.0.s8 %v1019
    %v1021 = vlaneseq
    %v1022 = vshrl.u32 %v1021, 7
    %v1023 = vsub.s32 %v1020, %v1022
    %v1024 = vrot.slane %v1016, %v1023
    %v1026 = vunpack.c.l.s4 1983009808
    %v1027 = vunpack.c.0.s8 %v1026
    %v1028 = vlaneseq
    %v1029 = vshrl.u32 %v1028, 7
    %v1030 = vsub.s32 %v1027, %v1029
    %v1031 = vrot.slane %v1017, %v1030
    %v1032 = vcombine.low %v1024, %v1031
    %v1033 = vcombine.low %v927, %v928
    %v1035 = vunpack.c.l.s4 1983009808
    %v1036 = vunpack.c.0.s8 %v1035
    %v1037 = vlaneseq
    %v1038 = vshrl.u32 %v1037, 7
    %v1039 = vsub.s32 %v1036, %v1038
    %v1040 = vrot.slane %v1033, %v1039
    %v1045 = vcombine.low %v958, %v966
    %v1046 = vcombine.low %v965, %v967
    %v1048 = vunpack.c.l.s4 1983009808
    %v1049 = vunpack.c.0.s8 %v1048
    %v1050 = vlaneseq
    %v1051 = vshrl.u32 %v1050, 7
    %v1052 = vsub.s32 %v1049, %v1051
    %v1053 = vrot.slane %v1045, %v1052
    %v1055 = vunpack.c.l.s4 1983009808
    %v1056 = vunpack.c.0.s8 %v1055
    %v1057 = vlaneseq
    %v1058 = vshrl.u32 %v1057, 7
    %v1059 = vsub.s32 %v1056, %v1058
    %v1060 = vrot.slane %v1046, %v1059
    %v1061 = vcombine.low %v1053, %v1060
    %v1062 = vcombine.low %v965, %v958
    %v1064 = vunpack.c.l.s4 1983009808
    %v1065 = vunpack.c.0.s8 %v1064
    %v1066 = vlaneseq
    %v1067 = vshrl.u32 %v1066, 7
    %v1068 = vsub.s32 %v1065, %v1067
    %v1069 = vrot.slane %v1062, %v1068
    %v1070 = vcombine.low %v1053, %v1069
    %v1071 = vcombine.low %v966, %v965
    %v1072 = vcombine.low %v967, %v958
    %v1074 = vunpack.c.l.s4 1983009808
    %v1075 = vunpack.c.0.s8 %v1074
    %v1076 = vlaneseq
    %v1077 = vshrl.u32 %v1076, 7
    %v1078 = vsub.s32 %v1075, %v1077
    %v1079 = vrot.slane %v1071, %v1078
    %v1081 = vunpack.c.l.s4 1983009808
    %v1082 = vunpack.c.0.s8 %v1081
    %v1083 = vlaneseq
    %v1084 = vshrl.u32 %v1083, 7
    %v1085 = vsub.s32 %v1082, %v1084
    %v1086 = vrot.slane %v1072, %v1085
    %v1087 = vcombine.low %v1079, %v1086
    %1092 = vmatprep.subr.mxu0 0.0
    %1093 = vmatpush1.msra.mxu0 %v944
    %1094 = vmatprep.subr.mxu0 0.0
    %1095 = vmatpush1.msra.mxu0 %v943
    %1096 = vmatprep.subr.mxu0 0.0
    %1097 = vmatpush1.msra.mxu0 %v942
    %1098 = vmatprep.subr.mxu0 0.0
    %1099 = vmatpush1.msra.mxu0 %v941
    %1100 = vmatprep.subr.mxu0 0.0
    %1101 = vmatpush1.msra.mxu0 %v940
    %1102 = vmatprep.subr.mxu0 0.0
    %1103 = vmatpush1.msra.mxu0 %v939
    %1104 = vmatprep.subr.mxu0 0.0
    %1105 = vmatpush1.msra.mxu0 %v938
    %1106 = vmatprep.subr.mxu0 0.0
    %1107 = vmatpush1.msra.mxu0 %v937
    %1108 = vmatprep.subr.mxu0 0.0
    %1109 = vmatpush1.msra.mxu0 %v936
    %1110 = vmatprep.subr.mxu0 0.0
    %1111 = vmatpush1.msra.mxu0 %v935
    %1112 = vmatprep.subr.mxu0 0.0
    %1113 = vmatpush1.msra.mxu0 %v934
    %1114 = vmatprep.subr.mxu0 0.0
    %1115 = vmatpush1.msra.mxu0 %v933
    %1116 = vmatprep.subr.mxu0 0.0
    %1117 = vmatpush1.msra.mxu0 %v932
    %1118 = vmatprep.subr.mxu0 0.0
    %1119 = vmatpush1.msra.mxu0 %v931
    %1120 = vmatprep.subr.mxu0 0.0
    %1121 = vmatpush1.msra.mxu0 %v930
    %1122 = vmatprep.subr.mxu0 0.0
    %1123 = vmatpush1.msra.mxu0 %v929
    %1124 = vmatprep.subr.mxu0 0.0
    %1125 = vmatpush2.msra.mxu0 0.0
    %1126 = vmatprep.subr.mxu0 0.0
    %1127 = vmatpush2.msra.mxu0 0.0
    %1128 = vmatprep.subr.mxu0 0.0
    %1129 = vmatpush2.msra.mxu0 0.0
    %1130 = vmatprep.subr.mxu0 0.0
    %1131 = vmatpush2.msra.mxu0 0.0
    %1132 = vmatprep.subr.mxu0 0.0
    %1133 = vmatpush2.msra.mxu0 0.0
    %1134 = vmatprep.subr.mxu0 0.0
    %1135 = vmatpush2.msra.mxu0 0.0
    %1136 = vmatprep.subr.mxu0 0.0
    %1137 = vmatpush2.msra.mxu0 0.0
    %1138 = vmatprep.subr.mxu0 0.0
    %1139 = vmatpush2.msra.mxu0 0.0
    %1140 = vmatprep.subr.mxu0 0.0
    %1141 = vmatpush2.msra.mxu0 0.0
    %1142 = vmatprep.subr.mxu0 0.0
    %1143 = vmatpush2.msra.mxu0 0.0
    %1144 = vmatprep.subr.mxu0 0.0
    %1145 = vmatpush2.msra.mxu0 0.0
    %1146 = vmatprep.subr.mxu0 0.0
    %1147 = vmatpush2.msra.mxu0 0.0
    %1148 = vmatprep.subr.mxu0 0.0
    %1149 = vmatpush2.msra.mxu0 0.0
    %1150 = vmatprep.subr.mxu0 0.0
    %1151 = vmatpush2.msra.mxu0 0.0
    %1152 = vmatprep.subr.mxu0 0.0
    %1153 = vmatpush2.msra.mxu0 0.0
    %1154 = vmatprep.subr.mxu0 0.0
    %1155 = vmatpush2.msra.mxu0 0.0
    %1156 = vmatprep.mubr.f32.mxu0 0.0
    %1157 = vmatmul.mubr.f32.gmra.mxu0 %v998
    %v1158 = vpop.f32.mrf.mxu0
    %v1159 = vadd.f32 %v1061, %v1158
    %v1160 = vpop.f32.mrf.mxu0
    %1161 = vmatprep.mubr.f32.mxu0 0.0
    %1162 = vmatmul.mubr.f32.gmra.mxu0 %v1015
    %v1163 = vpop.f32.mrf.mxu0
    %v1164 = vadd.f32 %v1070, %v1163
    %v1165 = vpop.f32.mrf.mxu0
    %1166 = vmatprep.mubr.f32.mxu0 0.0
    %1167 = vmatmul.mubr.f32.gmra.mxu0 %v1032
    %v1168 = vpop.f32.mrf.mxu0
    %v1169 = vadd.f32 %v1087, %v1168
    %v1170 = vpop.f32.mrf.mxu0
    %1171 = vmatprep.mubr.f32.mxu0 0.0
    %1172 = vmatmul.mubr.f32.gmra.mxu0 %v1040
    %v1173 = vpop.f32.mrf.mxu0
    %v1174 = vadd.f32 %v1079, %v1173
    %v1175 = vpop.f32.mrf.mxu0
    %1176 = vdwg.mxu0
    %v1181 = vcombine.high %v1159, %v1159
    %v1183 = vunpack.c.l.s4 1983009808
    %v1184 = vunpack.c.0.s8 %v1183
    %v1185 = vlaneseq
    %v1186 = vshrl.u32 %v1185, 7
    %v1187 = vsub.s32 %v1184, %v1186
    %v1188 = vrot.slane %v1159, %v1187
    %v1190 = vunpack.c.l.s4 1983009808
    %v1191 = vunpack.c.0.s8 %v1190
    %v1192 = vlaneseq
    %v1193 = vshrl.u32 %v1192, 7
    %v1194 = vsub.s32 %v1191, %v1193
    %v1195 = vrot.slane %v1181, %v1194
    %v1196 = vcombine.high %v1188, %v1188
    %v1197 = vcombine.high %v1195, %v1195
    %v1198 = vcombine.high %v1164, %v1164
    %v1200 = vunpack.c.l.s4 1983009808
    %v1201 = vunpack.c.0.s8 %v1200
    %v1202 = vlaneseq
    %v1203 = vshrl.u32 %v1202, 7
    %v1204 = vsub.s32 %v1201, %v1203
    %v1205 = vrot.slane %v1164, %v1204
    %v1207 = vunpack.c.l.s4 1983009808
    %v1208 = vunpack.c.0.s8 %v1207
    %v1209 = vlaneseq
    %v1210 = vshrl.u32 %v1209, 7
    %v1211 = vsub.s32 %v1208, %v1210
    %v1212 = vrot.slane %v1198, %v1211
    %v1213 = vcombine.high %v1205, %v1205
    %v1214 = vcombine.high %v1212, %v1212
    %v1215 = vcombine.high %v1169, %v1169
    %v1217 = vunpack.c.l.s4 1983009808
    %v1218 = vunpack.c.0.s8 %v1217
    %v1219 = vlaneseq
    %v1220 = vshrl.u32 %v1219, 7
    %v1221 = vsub.s32 %v1218, %v1220
    %v1222 = vrot.slane %v1169, %v1221
    %v1224 = vunpack.c.l.s4 1983009808
    %v1225 = vunpack.c.0.s8 %v1224
    %v1226 = vlaneseq
    %v1227 = vshrl.u32 %v1226, 7
    %v1228 = vsub.s32 %v1225, %v1227
    %v1229 = vrot.slane %v1215, %v1228
    %v1230 = vcombine.high %v1222, %v1222
    %v1231 = vcombine.high %v1229, %v1229
    %v1233 = vunpack.c.l.s4 1983009808
    %v1234 = vunpack.c.0.s8 %v1233
    %v1235 = vlaneseq
    %v1236 = vshrl.u32 %v1235, 7
    %v1237 = vsub.s32 %v1234, %v1236
    %v1238 = vrot.slane %v1174, %v1237
    %v1239 = vcombine.high %v1238, %v1238
    %v1240 = vcombine.low %v1188, %v1196
    %v1241 = vcombine.low %v1195, %v1197
    %v1243 = vunpack.c.l.s4 1983009808
    %v1244 = vunpack.c.0.s8 %v1243
    %v1245 = vlaneseq
    %v1246 = vshrl.u32 %v1245, 7
    %v1247 = vsub.s32 %v1244, %v1246
    %v1248 = vrot.slane %v1240, %v1247
    %v1250 = vunpack.c.l.s4 1983009808
    %v1251 = vunpack.c.0.s8 %v1250
    %v1252 = vlaneseq
    %v1253 = vshrl.u32 %v1252, 7
    %v1254 = vsub.s32 %v1251, %v1253
    %v1255 = vrot.slane %v1241, %v1254
    %v1256 = vcombine.low %v1248, %v1255
    %v1257 = vcombine.low %v1205, %v1213
    %v1259 = vunpack.c.l.s4 1983009808
    %v1260 = vunpack.c.0.s8 %v1259
    %v1261 = vlaneseq
    %v1262 = vshrl.u32 %v1261, 7
    %v1263 = vsub.s32 %v1260, %v1262
    %v1264 = vrot.slane %v1257, %v1263
    %v1266 = vunpack.c.l.s4 1983009808
    %v1267 = vunpack.c.0.s8 %v1266
    %v1268 = vlaneseq
    %v1269 = vshrl.u32 %v1268, 7
    %v1270 = vsub.s32 %v1267, %v1269
    %v1271 = vrot.slane %v1212, %v1270
    %v1272 = vcombine.low %v1264, %v1271
    %v1273 = vcombine.low %v1214, %v1222
    %v1274 = vcombine.low %v1230, %v1229
    %v1276 = vunpack.c.l.s4 1983009808
    %v1277 = vunpack.c.0.s8 %v1276
    %v1278 = vlaneseq
    %v1279 = vshrl.u32 %v1278, 7
    %v1280 = vsub.s32 %v1277, %v1279
    %v1281 = vrot.slane %v1273, %v1280
    %v1283 = vunpack.c.l.s4 1983009808
    %v1284 = vunpack.c.0.s8 %v1283
    %v1285 = vlaneseq
    %v1286 = vshrl.u32 %v1285, 7
    %v1287 = vsub.s32 %v1284, %v1286
    %v1288 = vrot.slane %v1274, %v1287
    %v1289 = vcombine.low %v1281, %v1288
    %v1290 = vcombine.low %v1231, %v1238
    %v1292 = vunpack.c.l.s4 1983009808
    %v1293 = vunpack.c.0.s8 %v1292
    %v1294 = vlaneseq
    %v1295 = vshrl.u32 %v1294, 7
    %v1296 = vsub.s32 %v1293, %v1295
    %v1297 = vrot.slane %v1290, %v1296
    %v1299 = vunpack.c.l.s4 1983009808
    %v1300 = vunpack.c.0.s8 %v1299
    %v1301 = vlaneseq
    %v1302 = vshrl.u32 %v1301, 7
    %v1303 = vsub.s32 %v1300, %v1302
    %v1304 = vrot.slane %v1239, %v1303
    %v1305 = vcombine.low %v1297, %v1304
    %vm1310 = vcmask 1045504
    %v1311 = vsel %vm1310, %v1272, -inf
    %v1312 = vmax.f32 %v1256, %v1311
    %v1313 = vrot.slane %v1312, 4
    %v1314 = vmax.f32 %v1312, %v1313
    %v1315 = vrot.slane %v1314, 2
    %v1316 = vmax.f32 %v1314, %v1315
    %v1317 = vrot.slane %v1316, 1
    %v1318 = vmax.f32 %v1316, %v1317
    %v1319 = vsel %vm1310, %v1305, -inf
    %v1320 = vmax.f32 %v1289, %v1319
    %v1321 = vrot.slane %v1320, 4
    %v1322 = vmax.f32 %v1320, %v1321
    %v1323 = vrot.slane %v1322, 2
    %v1324 = vmax.f32 %v1322, %v1323
    %v1325 = vrot.slane %v1324, 1
    %v1326 = vmax.f32 %v1324, %v1325
    %v1327 = vld [vmem:[%s8] sm:$0xff]
    %v1328 = vld [vmem:[%s8 + $0x8] sm:$0xff]
    %v1329 = vld [vmem:[%s8 + $0x10] sm:$0xff]
    %v1330 = vld [vmem:[%s8 + $0x18] sm:$0xff]
    %v1331 = vld [vmem:[%s8 + $0x20] sm:$0xff]
    %v1332 = vld [vmem:[%s8 + $0x28] sm:$0xff]
    %v1333 = vld [vmem:[%s8 + $0x30] sm:$0xff]
    %v1334 = vld [vmem:[%s8 + $0x38] sm:$0xff]
    %v1335 = vld [vmem:[%s8 + $0x40] sm:$0xff]
    %v1336 = vld [vmem:[%s8 + $0x48] sm:$0xff]
    %v1337 = vld [vmem:[%s8 + $0x50] sm:$0xff]
    %v1338 = vld [vmem:[%s8 + $0x58] sm:$0xff]
    %v1339 = vld [vmem:[%s8 + $0x60] sm:$0xff]
    %v1340 = vld [vmem:[%s8 + $0x68] sm:$0xff]
    %v1341 = vld [vmem:[%s8 + $0x70] sm:$0xff]
    %v1342 = vld [vmem:[%s8 + $0x78] sm:$0xff]
    %v1343 = vld [vmem:[#allocation10] sm:$0x1]
    %v1345 = vlaneseq
    %v1346 = vshrl.u32 %v1345, 7
    %v1347 = vsub.s32 0, %v1346
    %v1348 = vrot.slane %v1343, %v1347
    %vm1352 = vcmask 1041409
    %v1353 = vsel %vm1352, %v1326, %v1318
    %1355 = vmatprep.subr.mxu0 0.0
    %1356 = vmatpush1.msra.mxu0 %v1342
    %1357 = vmatprep.subr.mxu0 0.0
    %1358 = vmatpush1.msra.mxu0 %v1341
    %1359 = vmatprep.subr.mxu0 0.0
    %1360 = vmatpush1.msra.mxu0 %v1340
    %1361 = vmatprep.subr.mxu0 0.0
    %1362 = vmatpush1.msra.mxu0 %v1339
    %1363 = vmatprep.subr.mxu0 0.0
    %1364 = vmatpush1.msra.mxu0 %v1338
    %1365 = vmatprep.subr.mxu0 0.0
    %1366 = vmatpush1.msra.mxu0 %v1337
    %1367 = vmatprep.subr.mxu0 0.0
    %1368 = vmatpush1.msra.mxu0 %v1336
    %1369 = vmatprep.subr.mxu0 0.0
    %1370 = vmatpush1.msra.mxu0 %v1335
    %1371 = vmatprep.subr.mxu0 0.0
    %1372 = vmatpush1.msra.mxu0 %v1334
    %1373 = vmatprep.subr.mxu0 0.0
    %1374 = vmatpush1.msra.mxu0 %v1333
    %1375 = vmatprep.subr.mxu0 0.0
    %1376 = vmatpush1.msra.mxu0 %v1332
    %1377 = vmatprep.subr.mxu0 0.0
    %1378 = vmatpush1.msra.mxu0 %v1331
    %1379 = vmatprep.subr.mxu0 0.0
    %1380 = vmatpush1.msra.mxu0 %v1330
    %1381 = vmatprep.subr.mxu0 0.0
    %1382 = vmatpush1.msra.mxu0 %v1329
    %1383 = vmatprep.subr.mxu0 0.0
    %1384 = vmatpush1.msra.mxu0 %v1328
    %1385 = vmatprep.subr.mxu0 0.0
    %1386 = vmatpush1.msra.mxu0 %v1327
    %1387 = vmatprep.subr.mxu0 0.0
    %1388 = vmatpush2.msra.mxu0 0.0
    %1389 = vmatprep.subr.mxu0 0.0
    %1390 = vmatpush2.msra.mxu0 0.0
    %1391 = vmatprep.subr.mxu0 0.0
    %1392 = vmatpush2.msra.mxu0 0.0
    %1393 = vmatprep.subr.mxu0 0.0
    %1394 = vmatpush2.msra.mxu0 0.0
    %1395 = vmatprep.subr.mxu0 0.0
    %1396 = vmatpush2.msra.mxu0 0.0
    %1397 = vmatprep.subr.mxu0 0.0
    %1398 = vmatpush2.msra.mxu0 0.0
    %1399 = vmatprep.subr.mxu0 0.0
    %1400 = vmatpush2.msra.mxu0 0.0
    %1401 = vmatprep.subr.mxu0 0.0
    %1402 = vmatpush2.msra.mxu0 0.0
    %1403 = vmatprep.subr.mxu0 0.0
    %1404 = vmatpush2.msra.mxu0 0.0
    %1405 = vmatprep.subr.mxu0 0.0
    %1406 = vmatpush2.msra.mxu0 0.0
    %1407 = vmatprep.subr.mxu0 0.0
    %1408 = vmatpush2.msra.mxu0 0.0
    %1409 = vmatprep.subr.mxu0 0.0
    %1410 = vmatpush2.msra.mxu0 0.0
    %1411 = vmatprep.subr.mxu0 0.0
    %1412 = vmatpush2.msra.mxu0 0.0
    %1413 = vmatprep.subr.mxu0 0.0
    %1414 = vmatpush2.msra.mxu0 0.0
    %1415 = vmatprep.subr.mxu0 0.0
    %1416 = vmatpush2.msra.mxu0 0.0
    %1417 = vmatprep.subr.mxu0 0.0
    %1418 = vmatpush2.msra.mxu0 0.0
    %1419 = vmatprep.mubr.f32.mxu0 0.0
    %1420 = vmatmul.mubr.f32.gmra.mxu0 %v1353
    %v1421 = vpop.f32.mrf.mxu0
    %v1422 = vadd.f32 %v1348, %v1421
    %v1423 = vpop.f32.mrf.mxu0
    %1424 = vdwg.mxu0
    %v1425 = vmax.f32 %v1422, 0.0
    %v1426 = vld [vmem:[%s10] sm:$0xff]
    %v1427 = vld [vmem:[%s10 + $0x8] sm:$0xff]
    %v1428 = vld [vmem:[%s10 + $0x10] sm:$0xff]
    %v1429 = vld [vmem:[%s10 + $0x18] sm:$0xff]
    %v1430 = vld [vmem:[%s10 + $0x20] sm:$0xff]
    %v1431 = vld [vmem:[%s10 + $0x28] sm:$0xff]
    %v1432 = vld [vmem:[%s10 + $0x30] sm:$0xff]
    %v1433 = vld [vmem:[%s10 + $0x38] sm:$0xff]
    %v1434 = vld [vmem:[%s10 + $0x40] sm:$0xff]
    %v1435 = vld [vmem:[%s10 + $0x48] sm:$0xff]
    %v1436 = vld [vmem:[%s10 + $0x50] sm:$0xff]
    %v1437 = vld [vmem:[%s10 + $0x58] sm:$0xff]
    %v1438 = vld [vmem:[%s10 + $0x60] sm:$0xff]
    %v1439 = vld [vmem:[%s10 + $0x68] sm:$0xff]
    %v1440 = vld [vmem:[%s10 + $0x70] sm:$0xff]
    %v1441 = vld [vmem:[%s10 + $0x78] sm:$0xff]
    %v1442 = vld [vmem:[#allocation11] sm:$0x1]
    %v1444 = vlaneseq
    %v1445 = vshrl.u32 %v1444, 7
    %v1446 = vsub.s32 0, %v1445
    %v1447 = vrot.slane %v1442, %v1446
    %1449 = vmatprep.subr.mxu0 0.0
    %1450 = vmatpush1.msra.mxu0 %v1441
    %1451 = vmatprep.subr.mxu0 0.0
    %1452 = vmatpush1.msra.mxu0 %v1440
    %1453 = vmatprep.subr.mxu0 0.0
    %1454 = vmatpush1.msra.mxu0 %v1439
    %1455 = vmatprep.subr.mxu0 0.0
    %1456 = vmatpush1.msra.mxu0 %v1438
    %1457 = vmatprep.subr.mxu0 0.0
    %1458 = vmatpush1.msra.mxu0 %v1437
    %1459 = vmatprep.subr.mxu0 0.0
    %1460 = vmatpush1.msra.mxu0 %v1436
    %1461 = vmatprep.subr.mxu0 0.0
    %1462 = vmatpush1.msra.mxu0 %v1435
    %1463 = vmatprep.subr.mxu0 0.0
    %1464 = vmatpush1.msra.mxu0 %v1434
    %1465 = vmatprep.subr.mxu0 0.0
    %1466 = vmatpush1.msra.mxu0 %v1433
    %1467 = vmatprep.subr.mxu0 0.0
    %1468 = vmatpush1.msra.mxu0 %v1432
    %1469 = vmatprep.subr.mxu0 0.0
    %1470 = vmatpush1.msra.mxu0 %v1431
    %1471 = vmatprep.subr.mxu0 0.0
    %1472 = vmatpush1.msra.mxu0 %v1430
    %1473 = vmatprep.subr.mxu0 0.0
    %1474 = vmatpush1.msra.mxu0 %v1429
    %1475 = vmatprep.subr.mxu0 0.0
    %1476 = vmatpush1.msra.mxu0 %v1428
    %1477 = vmatprep.subr.mxu0 0.0
    %1478 = vmatpush1.msra.mxu0 %v1427
    %1479 = vmatprep.subr.mxu0 0.0
    %1480 = vmatpush1.msra.mxu0 %v1426
    %1481 = vmatprep.subr.mxu0 0.0
    %1482 = vmatpush2.msra.mxu0 0.0
    %1483 = vmatprep.subr.mxu0 0.0
    %1484 = vmatpush2.msra.mxu0 0.0
    %1485 = vmatprep.subr.mxu0 0.0
    %1486 = vmatpush2.msra.mxu0 0.0
    %1487 = vmatprep.subr.mxu0 0.0
    %1488 = vmatpush2.msra.mxu0 0.0
    %1489 = vmatprep.subr.mxu0 0.0
    %1490 = vmatpush2.msra.mxu0 0.0
    %1491 = vmatprep.subr.mxu0 0.0
    %1492 = vmatpush2.msra.mxu0 0.0
    %1493 = vmatprep.subr.mxu0 0.0
    %1494 = vmatpush2.msra.mxu0 0.0
    %1495 = vmatprep.subr.mxu0 0.0
    %1496 = vmatpush2.msra.mxu0 0.0
    %1497 = vmatprep.subr.mxu0 0.0
    %1498 = vmatpush2.msra.mxu0 0.0
    %1499 = vmatprep.subr.mxu0 0.0
    %1500 = vmatpush2.msra.mxu0 0.0
    %1501 = vmatprep.subr.mxu0 0.0
    %1502 = vmatpush2.msra.mxu0 0.0
    %1503 = vmatprep.subr.mxu0 0.0
    %1504 = vmatpush2.msra.mxu0 0.0
    %1505 = vmatprep.subr.mxu0 0.0
    %1506 = vmatpush2.msra.mxu0 0.0
    %1507 = vmatprep.subr.mxu0 0.0
    %1508 = vmatpush2.msra.mxu0 0.0
    %1509 = vmatprep.subr.mxu0 0.0
    %1510 = vmatpush2.msra.mxu0 0.0
    %1511 = vmatprep.subr.mxu0 0.0
    %1512 = vmatpush2.msra.mxu0 0.0
    %1513 = vmatprep.mubr.f32.mxu0 0.0
    %1514 = vmatmul.mubr.f32.gmra.mxu0 %v1425
    %v1515 = vpop.f32.mrf.mxu0
    %v1516 = vadd.f32 %v1447, %v1515
    %v1517 = vpop.f32.mrf.mxu0
    %1518 = vdwg.mxu0
    %v1519 = vld [vmem:[%s1] sm:$0x3]
    %v1520 = vmul.f32 %v1516, 0.5
    %v1521 = vmul.f32 %v1520, 1.442695
    %v1522 = vpow.pop %v1521
    %1524 = vrot.lane.b32.xlu0 %v1522, 120
    %v1525 = vpop.permute.xlu0 %1524
    %v1527 = vmul.f32 %v1519, %v1525
    %v1528 = vadd.f32 %v1527, %v1516
    %v1529 = vld [vmem:[#allocation13] sm:$0xff]
    %v1530 = vld [vmem:[#allocation14] sm:$0x1]
    %v1532 = vlaneseq
    %v1533 = vshrl.u32 %v1532, 7
    %v1534 = vsub.s32 0, %v1533
    %v1535 = vrot.slane %v1530, %v1534
    %vm1537 = vcmask 64512
    %v1539 = vsel %vm1537, %v1528, 0
    %1541 = vmatprep.subr.mxu0 0.0
    %1542 = vmatpush1.msra.mxu0 0.0
    %1543 = vmatprep.subr.mxu0 0.0
    %1544 = vmatpush1.msra.mxu0 0.0
    %1545 = vmatprep.subr.mxu0 0.0
    %1546 = vmatpush1.msra.mxu0 0.0
    %1547 = vmatprep.subr.mxu0 0.0
    %1548 = vmatpush1.msra.mxu0 0.0
    %1549 = vmatprep.subr.mxu0 0.0
    %1550 = vmatpush1.msra.mxu0 0.0
    %1551 = vmatprep.subr.mxu0 0.0
    %1552 = vmatpush1.msra.mxu0 0.0
    %1553 = vmatprep.subr.mxu0 0.0
    %1554 = vmatpush1.msra.mxu0 0.0
    %1555 = vmatprep.subr.mxu0 0.0
    %1556 = vmatpush1.msra.mxu0 0.0
    %1557 = vmatprep.subr.mxu0 0.0
    %1558 = vmatpush1.msra.mxu0 0.0
    %1559 = vmatprep.subr.mxu0 0.0
    %1560 = vmatpush1.msra.mxu0 0.0
    %1561 = vmatprep.subr.mxu0 0.0
    %1562 = vmatpush1.msra.mxu0 0.0
    %1563 = vmatprep.subr.mxu0 0.0
    %1564 = vmatpush1.msra.mxu0 0.0
    %1565 = vmatprep.subr.mxu0 0.0
    %1566 = vmatpush1.msra.mxu0 0.0
    %1567 = vmatprep.subr.mxu0 0.0
    %1568 = vmatpush1.msra.mxu0 0.0
    %1569 = vmatprep.subr.mxu0 0.0
    %1570 = vmatpush1.msra.mxu0 0.0
    %1571 = vmatprep.subr.mxu0 0.0
    %1572 = vmatpush1.msra.mxu0 %v1529
    %1573 = vmatprep.subr.mxu0 0.0
    %1574 = vmatpush2.msra.mxu0 0.0
    %1575 = vmatprep.subr.mxu0 0.0
    %1576 = vmatpush2.msra.mxu0 0.0
    %1577 = vmatprep.subr.mxu0 0.0
    %1578 = vmatpush2.msra.mxu0 0.0
    %1579 = vmatprep.subr.mxu0 0.0
    %1580 = vmatpush2.msra.mxu0 0.0
    %1581 = vmatprep.subr.mxu0 0.0
    %1582 = vmatpush2.msra.mxu0 0.0
    %1583 = vmatprep.subr.mxu0 0.0
    %1584 = vmatpush2.msra.mxu0 0.0
    %1585 = vmatprep.subr.mxu0 0.0
    %1586 = vmatpush2.msra.mxu0 0.0
    %1587 = vmatprep.subr.mxu0 0.0
    %1588 = vmatpush2.msra.mxu0 0.0
    %1589 = vmatprep.subr.mxu0 0.0
    %1590 = vmatpush2.msra.mxu0 0.0
    %1591 = vmatprep.subr.mxu0 0.0
    %1592 = vmatpush2.msra.mxu0 0.0
    %1593 = vmatprep.subr.mxu0 0.0
    %1594 = vmatpush2.msra.mxu0 0.0
    %1595 = vmatprep.subr.mxu0 0.0
    %1596 = vmatpush2.msra.mxu0 0.0
    %1597 = vmatprep.subr.mxu0 0.0
    %1598 = vmatpush2.msra.mxu0 0.0
    %1599 = vmatprep.subr.mxu0 0.0
    %1600 = vmatpush2.msra.mxu0 0.0
    %1601 = vmatprep.subr.mxu0 0.0
    %1602 = vmatpush2.msra.mxu0 0.0
    %1603 = vmatprep.subr.mxu0 0.0
    %1604 = vmatpush2.msra.mxu0 0.0
    %1605 = vmatprep.mubr.f32.mxu0 0.0
    %1606 = vmatmul.mubr.f32.gmra.mxu0 %v1539
    %v1607 = vpop.f32.mrf.mxu0
    %v1608 = vadd.f32 %v1535, %v1607
    %v1609 = vpop.f32.mrf.mxu0
    %1610 = vdwg.mxu0
    %v1611 = vmax.f32 %v1608, 0.0
    %v1612 = vld [vmem:[#allocation16] sm:$0xff]
    %v1613 = vld [vmem:[#allocation16 + $0x8] sm:$0xff]
    %v1614 = vld [vmem:[#allocation16 + $0x10] sm:$0xff]
    %v1615 = vld [vmem:[#allocation16 + $0x18] sm:$0xff]
    %v1616 = vld [vmem:[#allocation16 + $0x20] sm:$0xff]
    %v1617 = vld [vmem:[#allocation16 + $0x28] sm:$0xff]
    %v1618 = vld [vmem:[#allocation16 + $0x30] sm:$0xff]
    %v1619 = vld [vmem:[#allocation16 + $0x38] sm:$0xff]
    %v1620 = vld [vmem:[#allocation16 + $0x40] sm:$0xff]
    %v1621 = vld [vmem:[#allocation16 + $0x48] sm:$0xff]
    %v1622 = vld [vmem:[#allocation16 + $0x50] sm:$0xff]
    %v1623 = vld [vmem:[#allocation16 + $0x58] sm:$0xff]
    %v1624 = vld [vmem:[#allocation16 + $0x60] sm:$0xff]
    %v1625 = vld [vmem:[#allocation16 + $0x68] sm:$0xff]
    %v1626 = vld [vmem:[#allocation16 + $0x70] sm:$0xff]
    %v1627 = vld [vmem:[#allocation16 + $0x78] sm:$0xff]
    %v1628 = vld [vmem:[#allocation17] sm:$0x1]
    %v1630 = vlaneseq
    %v1631 = vshrl.u32 %v1630, 7
    %v1632 = vsub.s32 0, %v1631
    %v1633 = vrot.slane %v1628, %v1632
    %1635 = vmatprep.subr.mxu0 0.0
    %1636 = vmatpush1.msra.mxu0 %v1627
    %1637 = vmatprep.subr.mxu0 0.0
    %1638 = vmatpush1.msra.mxu0 %v1626
    %1639 = vmatprep.subr.mxu0 0.0
    %1640 = vmatpush1.msra.mxu0 %v1625
    %1641 = vmatprep.subr.mxu0 0.0
    %1642 = vmatpush1.msra.mxu0 %v1624
    %1643 = vmatprep.subr.mxu0 0.0
    %1644 = vmatpush1.msra.mxu0 %v1623
    %1645 = vmatprep.subr.mxu0 0.0
    %1646 = vmatpush1.msra.mxu0 %v1622
    %1647 = vmatprep.subr.mxu0 0.0
    %1648 = vmatpush1.msra.mxu0 %v1621
    %1649 = vmatprep.subr.mxu0 0.0
    %1650 = vmatpush1.msra.mxu0 %v1620
    %1651 = vmatprep.subr.mxu0 0.0
    %1652 = vmatpush1.msra.mxu0 %v1619
    %1653 = vmatprep.subr.mxu0 0.0
    %1654 = vmatpush1.msra.mxu0 %v1618
    %1655 = vmatprep.subr.mxu0 0.0
    %1656 = vmatpush1.msra.mxu0 %v1617
    %1657 = vmatprep.subr.mxu0 0.0
    %1658 = vmatpush1.msra.mxu0 %v1616
    %1659 = vmatprep.subr.mxu0 0.0
    %1660 = vmatpush1.msra.mxu0 %v1615
    %1661 = vmatprep.subr.mxu0 0.0
    %1662 = vmatpush1.msra.mxu0 %v1614
    %1663 = vmatprep.subr.mxu0 0.0
    %1664 = vmatpush1.msra.mxu0 %v1613
    %1665 = vmatprep.subr.mxu0 0.0
    %1666 = vmatpush1.msra.mxu0 %v1612
    %1667 = vmatprep.subr.mxu0 0.0
    %1668 = vmatpush2.msra.mxu0 0.0
    %1669 = vmatprep.subr.mxu0 0.0
    %1670 = vmatpush2.msra.mxu0 0.0
    %1671 = vmatprep.subr.mxu0 0.0
    %1672 = vmatpush2.msra.mxu0 0.0
    %1673 = vmatprep.subr.mxu0 0.0
    %1674 = vmatpush2.msra.mxu0 0.0
    %1675 = vmatprep.subr.mxu0 0.0
    %1676 = vmatpush2.msra.mxu0 0.0
    %1677 = vmatprep.subr.mxu0 0.0
    %1678 = vmatpush2.msra.mxu0 0.0
    %1679 = vmatprep.subr.mxu0 0.0
    %1680 = vmatpush2.msra.mxu0 0.0
    %1681 = vmatprep.subr.mxu0 0.0
    %1682 = vmatpush2.msra.mxu0 0.0
    %1683 = vmatprep.subr.mxu0 0.0
    %1684 = vmatpush2.msra.mxu0 0.0
    %1685 = vmatprep.subr.mxu0 0.0
    %1686 = vmatpush2.msra.mxu0 0.0
    %1687 = vmatprep.subr.mxu0 0.0
    %1688 = vmatpush2.msra.mxu0 0.0
    %1689 = vmatprep.subr.mxu0 0.0
    %1690 = vmatpush2.msra.mxu0 0.0
    %1691 = vmatprep.subr.mxu0 0.0
    %1692 = vmatpush2.msra.mxu0 0.0
    %1693 = vmatprep.subr.mxu0 0.0
    %1694 = vmatpush2.msra.mxu0 0.0
    %1695 = vmatprep.subr.mxu0 0.0
    %1696 = vmatpush2.msra.mxu0 0.0
    %1697 = vmatprep.subr.mxu0 0.0
    %1698 = vmatpush2.msra.mxu0 0.0
    %1699 = vmatprep.mubr.f32.mxu0 0.0
    %1700 = vmatmul.mubr.f32.gmra.mxu0 %v1611
    %v1701 = vpop.f32.mrf.mxu0
    %v1702 = vadd.f32 %v1633, %v1701
    %v1703 = vpop.f32.mrf.mxu0
    %1704 = vdwg.mxu0
    %v1705 = vmax.f32 %v1702, 0.0
    %v1706 = vld [vmem:[%s16] sm:$0xff]
    %v1707 = vld [vmem:[%s16 + $0x8] sm:$0xff]
    %v1708 = vld [vmem:[%s16 + $0x10] sm:$0xff]
    %v1709 = vld [vmem:[%s16 + $0x18] sm:$0xff]
    %v1710 = vld [vmem:[%s16 + $0x20] sm:$0xff]
    %v1711 = vld [vmem:[%s16 + $0x28] sm:$0xff]
    %v1712 = vld [vmem:[%s16 + $0x30] sm:$0xff]
    %v1713 = vld [vmem:[%s16 + $0x38] sm:$0xff]
    %v1714 = vld [vmem:[%s16 + $0x40] sm:$0xff]
    %v1715 = vld [vmem:[%s16 + $0x48] sm:$0xff]
    %v1716 = vld [vmem:[%s16 + $0x50] sm:$0xff]
    %v1717 = vld [vmem:[%s16 + $0x58] sm:$0xff]
    %v1718 = vld [vmem:[%s16 + $0x60] sm:$0xff]
    %v1719 = vld [vmem:[%s16 + $0x68] sm:$0xff]
    %v1720 = vld [vmem:[%s16 + $0x70] sm:$0xff]
    %v1721 = vld [vmem:[%s16 + $0x78] sm:$0xff]
    %v1722 = vld [vmem:[#allocation19] sm:$0x1]
    %v1724 = vlaneseq
    %v1725 = vshrl.u32 %v1724, 7
    %v1726 = vsub.s32 0, %v1725
    %v1727 = vrot.slane %v1722, %v1726
    %1729 = vmatprep.subr.mxu0 0.0
    %1730 = vmatpush1.msra.mxu0 %v1721
    %1731 = vmatprep.subr.mxu0 0.0
    %1732 = vmatpush1.msra.mxu0 %v1720
    %1733 = vmatprep.subr.mxu0 0.0
    %1734 = vmatpush1.msra.mxu0 %v1719
    %1735 = vmatprep.subr.mxu0 0.0
    %1736 = vmatpush1.msra.mxu0 %v1718
    %1737 = vmatprep.subr.mxu0 0.0
    %1738 = vmatpush1.msra.mxu0 %v1717
    %1739 = vmatprep.subr.mxu0 0.0
    %1740 = vmatpush1.msra.mxu0 %v1716
    %1741 = vmatprep.subr.mxu0 0.0
    %1742 = vmatpush1.msra.mxu0 %v1715
    %1743 = vmatprep.subr.mxu0 0.0
    %1744 = vmatpush1.msra.mxu0 %v1714
    %1745 = vmatprep.subr.mxu0 0.0
    %1746 = vmatpush1.msra.mxu0 %v1713
    %1747 = vmatprep.subr.mxu0 0.0
    %1748 = vmatpush1.msra.mxu0 %v1712
    %1749 = vmatprep.subr.mxu0 0.0
    %1750 = vmatpush1.msra.mxu0 %v1711
    %1751 = vmatprep.subr.mxu0 0.0
    %1752 = vmatpush1.msra.mxu0 %v1710
    %1753 = vmatprep.subr.mxu0 0.0
    %1754 = vmatpush1.msra.mxu0 %v1709
    %1755 = vmatprep.subr.mxu0 0.0
    %1756 = vmatpush1.msra.mxu0 %v1708
    %1757 = vmatprep.subr.mxu0 0.0
    %1758 = vmatpush1.msra.mxu0 %v1707
    %1759 = vmatprep.subr.mxu0 0.0
    %1760 = vmatpush1.msra.mxu0 %v1706
    %1761 = vmatprep.subr.mxu0 0.0
    %1762 = vmatpush2.msra.mxu0 0.0
    %1763 = vmatprep.subr.mxu0 0.0
    %1764 = vmatpush2.msra.mxu0 0.0
    %1765 = vmatprep.subr.mxu0 0.0
    %1766 = vmatpush2.msra.mxu0 0.0
    %1767 = vmatprep.subr.mxu0 0.0
    %1768 = vmatpush2.msra.mxu0 0.0
    %1769 = vmatprep.subr.mxu0 0.0
    %1770 = vmatpush2.msra.mxu0 0.0
    %1771 = vmatprep.subr.mxu0 0.0
    %1772 = vmatpush2.msra.mxu0 0.0
    %1773 = vmatprep.subr.mxu0 0.0
    %1774 = vmatpush2.msra.mxu0 0.0
    %1775 = vmatprep.subr.mxu0 0.0
    %1776 = vmatpush2.msra.mxu0 0.0
    %1777 = vmatprep.subr.mxu0 0.0
    %1778 = vmatpush2.msra.mxu0 0.0
    %1779 = vmatprep.subr.mxu0 0.0
    %1780 = vmatpush2.msra.mxu0 0.0
    %1781 = vmatprep.subr.mxu0 0.0
    %1782 = vmatpush2.msra.mxu0 0.0
    %1783 = vmatprep.subr.mxu0 0.0
    %1784 = vmatpush2.msra.mxu0 0.0
    %1785 = vmatprep.subr.mxu0 0.0
    %1786 = vmatpush2.msra.mxu0 0.0
    %1787 = vmatprep.subr.mxu0 0.0
    %1788 = vmatpush2.msra.mxu0 0.0
    %1789 = vmatprep.subr.mxu0 0.0
    %1790 = vmatpush2.msra.mxu0 0.0
    %1791 = vmatprep.subr.mxu0 0.0
    %1792 = vmatpush2.msra.mxu0 0.0
    %1793 = vmatprep.mubr.f32.mxu0 0.0
    %1794 = vmatmul.mubr.f32.gmra.mxu0 %v1705
    %v1795 = vpop.f32.mrf.mxu0
    %v1796 = vadd.f32 %v1727, %v1795
    %v1797 = vpop.f32.mrf.mxu0
    %1798 = vdwg.mxu0
    %vm1799 = vcmask 58368
    %1800 = vst.msk [vmem:[#allocation20] sm:$0x3] %vm1799, %v1528
    %1801 = vst.msk [vmem:[#allocation21] sm:$0x3] %vm1799, %v1516
    %1803 = vrot.lane.b32.xlu0 %v1516, 120
    %v1804 = vpop.permute.xlu0 %1803
    %1806 = vst.msk [vmem:[#allocation23] sm:$0x3] %vm1799, %v1804
    %vm1807 = vcmask 517120
    %1808 = vst.msk [vmem:[%s21] sm:$0x3] %vm1807, %v1796
    // Predicated region
    $region118: #{_lambda_.1} parent=1 // pred_check
      _
    $region119: #{_lambda_.1} parent=1 // pred_check_branch
      %1810 = sbr.rel (0) target = $region121
    $region120: #{_lambda_.1} parent=1 // pred_region
      %s1812 = ssub.s32 32, 32
      %1813 = vsyncadd [#allocation4], %s1812
      %s1815 = sshll.u32 [#allocation20], 4
      %s1816 = int_to_ptr.vmem [resolvable:$true] %s1815
      %1818 = dma.vmem_to_hbm [thread:$0]  %s1816, 32, %s18, [#allocation4]
    $region121: #{_lambda_.1} parent=1 // pred_fallthru
      _
    // Predicated region
    $region122: #{_lambda_.1} parent=1 // pred_check
      _
    $region123: #{_lambda_.1} parent=1 // pred_check_branch
      %1820 = sbr.rel (0) target = $region125
    $region124: #{_lambda_.1} parent=1 // pred_region
      %s1822 = ssub.s32 32, 32
      %1823 = vsyncadd [#allocation22], %s1822
      %s1825 = sshll.u32 [#allocation21], 4
      %s1826 = int_to_ptr.vmem [resolvable:$true] %s1825
      %1828 = dma.vmem_to_hbm [thread:$0]  %s1826, 32, %s19, [#allocation22]
    $region125: #{_lambda_.1} parent=1 // pred_fallthru
      _
    // Predicated region
    $region126: #{_lambda_.1} parent=1 // pred_check
      _
    $region127: #{_lambda_.1} parent=1 // pred_check_branch
      %1830 = sbr.rel (0) target = $region129
    $region128: #{_lambda_.1} parent=1 // pred_region
      %s1832 = ssub.s32 32, 32
      %1833 = vsyncadd [#allocation22], %s1832
      %s1835 = sshll.u32 [#allocation23], 4
      %s1836 = int_to_ptr.vmem [resolvable:$true] %s1835
      %1838 = dma.vmem_to_hbm [thread:$0]  %s1836, 32, %s20, [#allocation22]
    $region129: #{_lambda_.1} parent=1 // pred_fallthru
      _
    // Predicated region
    $region130: #{_lambda_.1} parent=1 // pred_check
      _
    $region131: #{_lambda_.1} parent=1 // pred_check_branch
      %1840 = sbr.rel (0) target = $region133
    $region132: #{_lambda_.1} parent=1 // pred_region
      _
    $region133: #{_lambda_.1} parent=1 // pred_fallthru
      _
    // Predicated region
    $region134: #{_lambda_.1} parent=1 // pred_check
      _
    $region135: #{_lambda_.1} parent=1 // pred_check_branch
      %1842 = sbr.rel (0) target = $region137
    $region136: #{_lambda_.1} parent=1 // pred_region
      %1843 = dma.done [#allocation4], 32
    $region137: #{_lambda_.1} parent=1 // pred_fallthru
      _
    // Predicated region
    $region138: #{_lambda_.1} parent=1 // pred_check
      _
    $region139: #{_lambda_.1} parent=1 // pred_check_branch
      %1845 = sbr.rel (0) target = $region141
    $region140: #{_lambda_.1} parent=1 // pred_region
      %1846 = dma.done [#allocation22], 32
    $region141: #{_lambda_.1} parent=1 // pred_fallthru
      _
    // Predicated region
    $region142: #{_lambda_.1} parent=1 // pred_check
      _
    $region143: #{_lambda_.1} parent=1 // pred_check_branch
      %1848 = sbr.rel (0) target = $region145
    $region144: #{_lambda_.1} parent=1 // pred_region
      %1849 = dma.done [#allocation22], 32
    $region145: #{_lambda_.1} parent=1 // pred_fallthru
      _
    // Predicated region
    $region146: #{_lambda_.1} parent=1 // pred_check
      _
    $region147: #{_lambda_.1} parent=1 // pred_check_branch
      %1851 = sbr.rel (0) target = $region149
    $region148: #{_lambda_.1} parent=1 // pred_region
      _
    $region149: #{_lambda_.1} parent=1 // pred_fallthru
      _
    %1852 = vsyncpa [#allocation3], 1
    %1853 = vsyncpa [#allocation6], 1
    %1854 = vsyncpa [#allocation9], 1
    %1855 = vsyncpa [#allocation12], 1
    %1856 = vsyncpa [#allocation15], 1
    %1857 = vsyncpa [#allocation18], 1
    %1858 = vsyncpa [#allocation4], 1
    %1859 = vsyncpa [#allocation22], 1

</llo_original>
